<compile_context>
chip_gen: v7x
topology: tpu7x:2x2x1
jax: 0.10.0
libtpu: 0.0.40
codegen_flags: <defaults>
</compile_context>

<pallas_src>
import math

import jax
import jax.numpy as jnp
from jax.experimental import pallas as pl
from jax.experimental.pallas import tpu as pltpu

NEG_SLOPE = 0.01  # nn.LeakyReLU default negative_slope


def _leaky_relu(z):
    return jnp.where(z > 0, z, NEG_SLOPE * z)


def make_fourier_kernel(fourier_order, hidden_size, num_hidden_layers,
                        compute_dtype):
    F, H, L = fourier_order, hidden_size, num_hidden_layers
    D = 4 * F + 2
    half = 2 * F + 1

    def mm(w, act):
        # MXU matmul; inputs optionally bf16, accumulation always f32.
        return jnp.dot(w.astype(compute_dtype), act.astype(compute_dtype),
                       preferred_element_type=jnp.float32)

    def kernel(x_ref, w_in_ref, b_in_ref, wc_ref, wp_ref, wf_ref, bh_ref,
               woc_ref, wop_ref, bo_ref, out_ref):
        x = x_ref[...]                       # (2, TB) f32, batch on lanes
        tb = x.shape[1]
        x0 = x[0:1, :]                       # (1, TB)
        x1 = x[1:2, :]

        # Fourier features, rows in PyTorch order.  One transcendental per
        # element: cos(t) = sin(t + pi/2); the raw-x rows are selected out.
        row = jax.lax.broadcasted_iota(jnp.int32, (D, tb), 0)
        j = row % half                       # position inside the x0/x1 band
        k = (j % F + 1).astype(jnp.float32)  # harmonic order 1..F
        is_cos = jnp.logical_and(j >= F, j < 2 * F)
        phase = jnp.where(is_cos, jnp.float32(math.pi / 2), jnp.float32(0.0))
        xc = jnp.where(row < half, x0, x1)   # (D, TB)
        feat = jnp.where(j == 2 * F, xc, jnp.sin(k * xc + phase))  # (D, TB)

        # Feature contributions of every hidden layer and of the output head
        # in a single stacked MXU pass: rows [i*H:(i+1)*H] belong to layer i,
        # the last row to the output head.
        feat_proj = mm(wf_ref[...], feat)                          # (L*H+1, TB)

        cur = _leaky_relu(mm(w_in_ref[...], feat) + b_in_ref[...])  # (H, TB)
        prev = jnp.zeros_like(cur)
        for i in range(L):
            z = mm(wc_ref[i], cur) + feat_proj[i * H:(i + 1) * H, :] + bh_ref[i]
            if i > 0:                        # layer 0 has no `prev` input
                z = z + mm(wp_ref[i], prev)
            prev, cur = cur, _leaky_relu(z)

        y = (mm(woc_ref[...], cur) + mm(wop_ref[...], prev)
             + feat_proj[L * H:, :] + bo_ref[...])                  # (1, TB)
        out_ref[...] = (jnp.tanh(y) + 1.0) * 0.5

    return kernel


def fourier_pallas(x, params, *, block_b=None, compute_dtype=jnp.float32):
    """x: (B, 2) f32 -> (B, 1) f32.  params from init_params()."""
    w_in, b_in, wh, bh, wo, bo = params
    H, D = w_in.shape
    F = (D - 2) // 4
    L = wh.shape[0]
    B = x.shape[0]

    # Split the stacked hidden weights (L, H, 2H+D) into the three operand
    # blocks [cur | prev | feat]; stack every layer's feat block (plus the
    # output head's) into one matrix for the single up-front MXU pass.
    wc = wh[:, :, :H]                                   # (L, H, H)
    wp = wh[:, :, H:2 * H]                              # (L, H, H) (wp[0] == 0)
    wf = wh[:, :, 2 * H:].reshape(L * H, D)             # (L*H, D)
    wf_all = jnp.concatenate([wf, wo[:, 2 * H:]], 0)    # (L*H+1, D)
    woc = wo[:, :H]                                     # (1, H)
    wop = wo[:, H:2 * H]                                # (1, H)

    if compute_dtype != jnp.float32:                    # cast weights once on host
        w_in, wc, wp, wf_all, woc, wop = (
            a.astype(compute_dtype) for a in (w_in, wc, wp, wf_all, woc, wop))

    # Large lane-dense batch tiles.  For big batches Bp // block_b >= 2 so the
    # 'parallel' grid axis can shard across both TensorCores on v7x.
    if block_b is None:
        block_b = B if B <= 512 else 512
    Bp = pl.cdiv(B, block_b) * block_b

    x_t = x.T                                # (2, B): batch on the lane axis
    if Bp != B:
        x_t = jnp.pad(x_t, ((0, 0), (0, Bp - B)))

    kernel = make_fourier_kernel(F, H, L, compute_dtype)

    operands = (x_t, w_in, b_in, wc, wp, wf_all, bh, woc, wop, bo)
    n_param = sum(int(p.size) for p in operands[1:])
    cost = pl.CostEstimate(
        flops=2 * B * (H * D + (L * H + 1) * D + (2 * L - 1) * H * H + 2 * H),
        transcendentals=B * (4 * F + 3),
        bytes_accessed=4 * (3 * B + n_param),
    )

    const = lambda *_: tuple(0 for _ in range(_[0].__class__ and 0))  # unused
    out = pl.pallas_call(
        kernel,
        out_shape=jax.ShapeDtypeStruct((1, Bp), jnp.float32),
        grid=(Bp // block_b,),
        in_specs=[
            pl.BlockSpec((2, block_b), lambda i: (0, i)),        # x (transposed)
            pl.BlockSpec((H, D), lambda i: (0, 0)),              # w_in
            pl.BlockSpec((H, 1), lambda i: (0, 0)),              # b_in
            pl.BlockSpec((L, H, H), lambda i: (0, 0, 0)),        # Wc (cur blocks)
            pl.BlockSpec((L, H, H), lambda i: (0, 0, 0)),        # Wp (prev blocks)
            pl.BlockSpec((L * H + 1, D), lambda i: (0, 0)),      # Wf stacked
            pl.BlockSpec((L, H, 1), lambda i: (0, 0, 0)),        # hidden biases
            pl.BlockSpec((1, H), lambda i: (0, 0)),              # w_out (cur)
            pl.BlockSpec((1, H), lambda i: (0, 0)),              # w_out (prev)
            pl.BlockSpec((1, 1), lambda i: (0, 0)),              # b_out
        ],
        out_specs=pl.BlockSpec((1, block_b), lambda i: (0, i)),
        compiler_params=pltpu.CompilerParams(
            dimension_semantics=("parallel",)),
        cost_estimate=cost,
    )(*operands)

    return out[:, :B].T                      # (B, 1)


def init_params(key, fourier_order, hidden_size, num_hidden_layers):
    """PyTorch nn.Linear-style init; weights stored (out, in) like PyTorch.

    Hidden-layer weights are stacked into (L, H, 2H+D) with column blocks
    [cur | prev | feat]; layer 0 gets a zero block for the absent `prev`
    input so all layers share one shape (algebraically identical)."""
    F, H, L = fourier_order, hidden_size, num_hidden_layers
    D = 4 * F + 2

    def linear(k, fan_in, fan_out):
        k1, k2 = jax.random.split(k)
        bound = float(fan_in) ** -0.5
        W = jax.random.uniform(k1, (fan_out, fan_in), jnp.float32, -bound, bound)
        b = jax.random.uniform(k2, (fan_out, 1), jnp.float32, -bound, bound)
        return W, b

    keys = jax.random.split(key, L + 2)
    w_in, b_in = linear(keys[0], D, H)
    wh_list, bh_list = [], []
    for i in range(L):
        if i == 0:
            W, b = linear(keys[1], H + D, H)           # acts on [cur | x]
            W = jnp.concatenate(
                [W[:, :H], jnp.zeros((H, H), jnp.float32), W[:, H:]], axis=1)
        else:
            W, b = linear(keys[1 + i], 2 * H + D, H)   # acts on [cur | prev | x]
        wh_list.append(W)
        bh_list.append(b)
    wh = jnp.stack(wh_list)                            # (L, H, 2H+D)
    bh = jnp.stack(bh_list)                            # (L, H, 1)
    wo, bo = linear(keys[-1], 2 * H + D, 1)            # (1, 2H+D), (1, 1)
    return (w_in, b_in, wh, bh, wo, bo)


def fourier_ref(x, params):
    """Pure-JAX f32 reference matching the PyTorch forward exactly."""
    w_in, b_in, wh, bh, wo, bo = params
    H, D = w_in.shape
    F = (D - 2) // 4
    L = wh.shape[0]
    orders = jnp.arange(1, F + 1, dtype=jnp.float32)
    xe = x[:, :, None]                                   # (B, 2, 1)
    ff = jnp.concatenate(
        [jnp.sin(orders * xe), jnp.cos(orders * xe), xe], axis=-1)
    feat = ff.reshape(x.shape[0], -1)                    # (B, 4F+2)
    cur = _leaky_relu(feat @ w_in.T + b_in[:, 0])
    prev = jnp.zeros_like(cur)
    for i in range(L):
        comb = jnp.concatenate([cur, prev, feat], axis=1)
        prev, cur = cur, _leaky_relu(comb @ wh[i].T + bh[i, :, 0])
    comb = jnp.concatenate([cur, prev, feat], axis=1)
    y = comb @ wo.T + bo[:, 0]
    return (jnp.tanh(y) + 1.0) * 0.5


if __name__ == "__main__":
    fourier_order = 4       # module default
    hidden_size = 32        # small hidden size for the test
    num_hidden_layers = 7   # module default
    B = 16

    key = jax.random.PRNGKey(0)
    kx, kp = jax.random.split(key)
    x = jax.random.uniform(kx, (B, 2), jnp.float32, -3.14159, 3.14159)
    params = init_params(kp, fourier_order, hidden_size, num_hidden_layers)

    out = jax.block_until_ready(fourier_pallas(x, params))
    ref = fourier_ref(x, params)

    assert out.shape == (B, 1)
    assert bool(jnp.all(jnp.isfinite(out)))
    assert bool(jnp.allclose(out, ref, atol=1e-2, rtol=1e-2))

    # bf16 MXU-input path (v6e/v7x): f32 accumulation, looser check.
    out_bf16 = jax.block_until_ready(
        fourier_pallas(x, params, compute_dtype=jnp.bfloat16))
    assert out_bf16.shape == (B, 1)
    assert bool(jnp.allclose(out_bf16, ref, atol=5e-2, rtol=5e-2))

    print("KERNEL_OK")
</pallas_src>

<mosaic_0001>
module attributes {stable_mosaic.version = 11 : i64} {
  func.func @kernel(%arg0: i32, %arg1: memref<2x16xf32, #tpu.memory_space<vmem>>, %arg2: memref<32x18xf32, #tpu.memory_space<vmem>>, %arg3: memref<32x1xf32, #tpu.memory_space<vmem>>, %arg4: memref<7x32x32xf32, #tpu.memory_space<vmem>>, %arg5: memref<7x32x32xf32, #tpu.memory_space<vmem>>, %arg6: memref<225x18xf32, #tpu.memory_space<vmem>>, %arg7: memref<7x32x1xf32, #tpu.memory_space<vmem>>, %arg8: memref<1x32xf32, #tpu.memory_space<vmem>>, %arg9: memref<1x32xf32, #tpu.memory_space<vmem>>, %arg10: memref<1x1xf32, #tpu.memory_space<vmem>>, %arg11: memref<1x16xf32, #tpu.memory_space<vmem>>) attributes {dimension_semantics = [#tpu.dimension_semantics<parallel>], iteration_bounds = array<i64: 1>, scalar_prefetch = 0 : i64, scratch_operands = 0 : i64, tpu.core_type = #tpu.core_type<tc>, window_params = [{transform_indices = @transform_0, window_bounds = array<i64: 2, 16>}, {pipeline_mode = #tpu.pipeline_mode<synchronous>, transform_indices = @transform_1, window_bounds = array<i64: 32, 18>}, {pipeline_mode = #tpu.pipeline_mode<synchronous>, transform_indices = @transform_2, window_bounds = array<i64: 32, 1>}, {pipeline_mode = #tpu.pipeline_mode<synchronous>, transform_indices = @transform_3, window_bounds = array<i64: 7, 32, 32>}, {pipeline_mode = #tpu.pipeline_mode<synchronous>, transform_indices = @transform_4, window_bounds = array<i64: 7, 32, 32>}, {pipeline_mode = #tpu.pipeline_mode<synchronous>, transform_indices = @transform_5, window_bounds = array<i64: 225, 18>}, {pipeline_mode = #tpu.pipeline_mode<synchronous>, transform_indices = @transform_6, window_bounds = array<i64: 7, 32, 1>}, {pipeline_mode = #tpu.pipeline_mode<synchronous>, transform_indices = @transform_7, window_bounds = array<i64: 1, 32>}, {pipeline_mode = #tpu.pipeline_mode<synchronous>, transform_indices = @transform_8, window_bounds = array<i64: 1, 32>}, {pipeline_mode = #tpu.pipeline_mode<synchronous>, transform_indices = @transform_9, window_bounds = array<i64: 1, 1>}, {transform_indices = @transform_10, window_bounds = array<i64: 1, 16>}]} {
    %c0 = arith.constant 0 : index
    %c0_0 = arith.constant 0 : index
    %0 = vector.load %arg1[%c0, %c0_0] : memref<2x16xf32, #tpu.memory_space<vmem>>, vector<2x16xf32>
    %1 = vector.extract_strided_slice %0 {offsets = [0, 0], sizes = [1, 16], strides = [1, 1]} : vector<2x16xf32> to vector<1x16xf32>
    %2 = vector.extract_strided_slice %0 {offsets = [1, 0], sizes = [1, 16], strides = [1, 1]} : vector<2x16xf32> to vector<1x16xf32>
    %3 = tpu.iota {dimensions = array<i32: 0>} : vector<18x16xi32>
    %c9_i32 = arith.constant 9 : i32
    %c0_i32 = arith.constant 0 : i32
    %4 = arith.cmpi eq, %c9_i32, %c0_i32 : i32
    %c1_i32 = arith.constant 1 : i32
    %5 = arith.select %4, %c1_i32, %c9_i32 : i32
    %6 = vector.broadcast %5 : i32 to vector<18x16xi32>
    %7 = arith.remsi %3, %6 : vector<18x16xi32>
    %c0_i32_1 = arith.constant 0 : i32
    %8 = vector.broadcast %c0_i32_1 : i32 to vector<18x16xi32>
    %9 = arith.cmpi ne, %7, %8 : vector<18x16xi32>
    %c0_i32_2 = arith.constant 0 : i32
    %10 = vector.broadcast %c0_i32_2 : i32 to vector<18x16xi32>
    %11 = arith.cmpi slt, %7, %10 : vector<18x16xi32>
    %c0_i32_3 = arith.constant 0 : i32
    %12 = arith.cmpi slt, %5, %c0_i32_3 : i32
    %13 = vector.broadcast %12 : i1 to vector<18x16xi1>
    %14 = vector.broadcast %13 : vector<18x16xi1> to vector<18x16xi1>
    %15 = arith.xori %11, %14 : vector<18x16xi1>
    %16 = arith.andi %15, %9 : vector<18x16xi1>
    %17 = vector.broadcast %5 : i32 to vector<18x16xi32>
    %18 = arith.addi %7, %17 : vector<18x16xi32>
    %19 = arith.select %16, %18, %7 : vector<18x16xi1>, vector<18x16xi32>
    %c4_i32 = arith.constant 4 : i32
    %c0_i32_4 = arith.constant 0 : i32
    %20 = arith.cmpi eq, %c4_i32, %c0_i32_4 : i32
    %c1_i32_5 = arith.constant 1 : i32
    %21 = arith.select %20, %c1_i32_5, %c4_i32 : i32
    %22 = vector.broadcast %21 : i32 to vector<18x16xi32>
    %23 = arith.remsi %19, %22 : vector<18x16xi32>
    %c0_i32_6 = arith.constant 0 : i32
    %24 = vector.broadcast %c0_i32_6 : i32 to vector<18x16xi32>
    %25 = arith.cmpi ne, %23, %24 : vector<18x16xi32>
    %c0_i32_7 = arith.constant 0 : i32
    %26 = vector.broadcast %c0_i32_7 : i32 to vector<18x16xi32>
    %27 = arith.cmpi slt, %23, %26 : vector<18x16xi32>
    %c0_i32_8 = arith.constant 0 : i32
    %28 = arith.cmpi slt, %21, %c0_i32_8 : i32
    %29 = vector.broadcast %28 : i1 to vector<18x16xi1>
    %30 = vector.broadcast %29 : vector<18x16xi1> to vector<18x16xi1>
    %31 = arith.xori %27, %30 : vector<18x16xi1>
    %32 = arith.andi %31, %25 : vector<18x16xi1>
    %33 = vector.broadcast %21 : i32 to vector<18x16xi32>
    %34 = arith.addi %23, %33 : vector<18x16xi32>
    %35 = arith.select %32, %34, %23 : vector<18x16xi1>, vector<18x16xi32>
    %c1_i32_9 = arith.constant 1 : i32
    %36 = vector.broadcast %c1_i32_9 : i32 to vector<18x16xi32>
    %37 = arith.addi %35, %36 : vector<18x16xi32>
    %38 = arith.sitofp %37 : vector<18x16xi32> to vector<18x16xf32>
    %c4_i32_10 = arith.constant 4 : i32
    %39 = vector.broadcast %c4_i32_10 : i32 to vector<18x16xi32>
    %40 = arith.cmpi sge, %19, %39 : vector<18x16xi32>
    %c8_i32 = arith.constant 8 : i32
    %41 = vector.broadcast %c8_i32 : i32 to vector<18x16xi32>
    %42 = arith.cmpi slt, %19, %41 : vector<18x16xi32>
    %43 = arith.andi %40, %42 : vector<18x16xi1>
    %cst = arith.constant 1.57079637 : f32
    %cst_11 = arith.constant 0.000000e+00 : f32
    %44 = vector.broadcast %cst : f32 to vector<18x16xf32>
    %45 = vector.broadcast %cst_11 : f32 to vector<18x16xf32>
    %46 = arith.select %43, %44, %45 : vector<18x16xi1>, vector<18x16xf32>
    %c9_i32_12 = arith.constant 9 : i32
    %47 = vector.broadcast %c9_i32_12 : i32 to vector<18x16xi32>
    %48 = arith.cmpi slt, %3, %47 : vector<18x16xi32>
    %49 = vector.shape_cast %1 : vector<1x16xf32> to vector<1x16xf32>
    %50 = vector.broadcast %49 : vector<1x16xf32> to vector<18x16xf32>
    %51 = vector.shape_cast %2 : vector<1x16xf32> to vector<1x16xf32>
    %52 = vector.broadcast %51 : vector<1x16xf32> to vector<18x16xf32>
    %53 = arith.select %48, %50, %52 : vector<18x16xi1>, vector<18x16xf32>
    %c8_i32_13 = arith.constant 8 : i32
    %54 = vector.broadcast %c8_i32_13 : i32 to vector<18x16xi32>
    %55 = arith.cmpi eq, %19, %54 : vector<18x16xi32>
    %56 = arith.mulf %38, %53 : vector<18x16xf32>
    %57 = arith.addf %56, %46 : vector<18x16xf32>
    %58 = math.sin %57 : vector<18x16xf32>
    %59 = arith.select %55, %53, %58 : vector<18x16xi1>, vector<18x16xf32>
    %c0_14 = arith.constant 0 : index
    %c0_15 = arith.constant 0 : index
    %60 = vector.load %arg6[%c0_14, %c0_15] : memref<225x18xf32, #tpu.memory_space<vmem>>, vector<225x18xf32>
    %cst_16 = arith.constant dense<0.000000e+00> : vector<225x16xf32>
    %61 = tpu.matmul %60, %59, %cst_16 {dimension_numbers = #tpu.dot_dimension_numbers<[1], [0], [0], [1], [0, 0, 1, 1], [], []>} : vector<225x18xf32>, vector<18x16xf32>, vector<225x16xf32> -> vector<225x16xf32>
    %c0_17 = arith.constant 0 : index
    %c0_18 = arith.constant 0 : index
    %62 = vector.load %arg2[%c0_17, %c0_18] : memref<32x18xf32, #tpu.memory_space<vmem>>, vector<32x18xf32>
    %cst_19 = arith.constant dense<0.000000e+00> : vector<32x16xf32>
    %63 = tpu.matmul %62, %59, %cst_19 {dimension_numbers = #tpu.dot_dimension_numbers<[1], [0], [0], [1], [0, 0, 1, 1], [], []>} : vector<32x18xf32>, vector<18x16xf32>, vector<32x16xf32> -> vector<32x16xf32>
    %c0_20 = arith.constant 0 : index
    %c0_21 = arith.constant 0 : index
    %64 = vector.load %arg3[%c0_20, %c0_21] : memref<32x1xf32, #tpu.memory_space<vmem>>, vector<32x1xf32>
    %65 = vector.broadcast %64 : vector<32x1xf32> to vector<32x16xf32>
    %66 = arith.addf %63, %65 : vector<32x16xf32>
    %cst_22 = arith.constant 0.000000e+00 : f32
    %67 = vector.broadcast %cst_22 : f32 to vector<32x16xf32>
    %68 = arith.cmpf ogt, %66, %67 : vector<32x16xf32>
    %cst_23 = arith.constant 0.00999999977 : f32
    %69 = vector.broadcast %cst_23 : f32 to vector<32x16xf32>
    %70 = arith.mulf %69, %66 : vector<32x16xf32>
    %71 = arith.select %68, %66, %70 : vector<32x16xi1>, vector<32x16xf32>
    %c0_24 = arith.constant 0 : index
    %c0_25 = arith.constant 0 : index
    %c0_26 = arith.constant 0 : index
    %72 = vector.load %arg4[%c0_24, %c0_25, %c0_26] : memref<7x32x32xf32, #tpu.memory_space<vmem>>, vector<1x32x32xf32>
    %73 = vector.shape_cast %72 : vector<1x32x32xf32> to vector<32x32xf32>
    %cst_27 = arith.constant dense<0.000000e+00> : vector<32x16xf32>
    %74 = tpu.matmul %73, %71, %cst_27 {dimension_numbers = #tpu.dot_dimension_numbers<[1], [0], [0], [1], [0, 0, 1, 1], [], []>} : vector<32x32xf32>, vector<32x16xf32>, vector<32x16xf32> -> vector<32x16xf32>
    %75 = vector.extract_strided_slice %61 {offsets = [0, 0], sizes = [32, 16], strides = [1, 1]} : vector<225x16xf32> to vector<32x16xf32>
    %76 = arith.addf %74, %75 : vector<32x16xf32>
    %c0_28 = arith.constant 0 : index
    %c0_29 = arith.constant 0 : index
    %c0_30 = arith.constant 0 : index
    %77 = vector.load %arg7[%c0_28, %c0_29, %c0_30] : memref<7x32x1xf32, #tpu.memory_space<vmem>>, vector<1x32x1xf32>
    %78 = vector.shape_cast %77 : vector<1x32x1xf32> to vector<32x1xf32>
    %79 = vector.broadcast %78 : vector<32x1xf32> to vector<32x16xf32>
    %80 = arith.addf %76, %79 : vector<32x16xf32>
    %cst_31 = arith.constant 0.000000e+00 : f32
    %81 = vector.broadcast %cst_31 : f32 to vector<32x16xf32>
    %82 = arith.cmpf ogt, %80, %81 : vector<32x16xf32>
    %cst_32 = arith.constant 0.00999999977 : f32
    %83 = vector.broadcast %cst_32 : f32 to vector<32x16xf32>
    %84 = arith.mulf %83, %80 : vector<32x16xf32>
    %85 = arith.select %82, %80, %84 : vector<32x16xi1>, vector<32x16xf32>
    %c1 = arith.constant 1 : index
    %c0_33 = arith.constant 0 : index
    %c0_34 = arith.constant 0 : index
    %86 = vector.load %arg4[%c1, %c0_33, %c0_34] : memref<7x32x32xf32, #tpu.memory_space<vmem>>, vector<1x32x32xf32>
    %87 = vector.shape_cast %86 : vector<1x32x32xf32> to vector<32x32xf32>
    %cst_35 = arith.constant dense<0.000000e+00> : vector<32x16xf32>
    %88 = tpu.matmul %87, %85, %cst_35 {dimension_numbers = #tpu.dot_dimension_numbers<[1], [0], [0], [1], [0, 0, 1, 1], [], []>} : vector<32x32xf32>, vector<32x16xf32>, vector<32x16xf32> -> vector<32x16xf32>
    %89 = vector.extract_strided_slice %61 {offsets = [32, 0], sizes = [32, 16], strides = [1, 1]} : vector<225x16xf32> to vector<32x16xf32>
    %90 = arith.addf %88, %89 : vector<32x16xf32>
    %c1_36 = arith.constant 1 : index
    %c0_37 = arith.constant 0 : index
    %c0_38 = arith.constant 0 : index
    %91 = vector.load %arg7[%c1_36, %c0_37, %c0_38] : memref<7x32x1xf32, #tpu.memory_space<vmem>>, vector<1x32x1xf32>
    %92 = vector.shape_cast %91 : vector<1x32x1xf32> to vector<32x1xf32>
    %93 = vector.broadcast %92 : vector<32x1xf32> to vector<32x16xf32>
    %94 = arith.addf %90, %93 : vector<32x16xf32>
    %c1_39 = arith.constant 1 : index
    %c0_40 = arith.constant 0 : index
    %c0_41 = arith.constant 0 : index
    %95 = vector.load %arg5[%c1_39, %c0_40, %c0_41] : memref<7x32x32xf32, #tpu.memory_space<vmem>>, vector<1x32x32xf32>
    %96 = vector.shape_cast %95 : vector<1x32x32xf32> to vector<32x32xf32>
    %cst_42 = arith.constant dense<0.000000e+00> : vector<32x16xf32>
    %97 = tpu.matmul %96, %71, %cst_42 {dimension_numbers = #tpu.dot_dimension_numbers<[1], [0], [0], [1], [0, 0, 1, 1], [], []>} : vector<32x32xf32>, vector<32x16xf32>, vector<32x16xf32> -> vector<32x16xf32>
    %98 = arith.addf %94, %97 : vector<32x16xf32>
    %cst_43 = arith.constant 0.000000e+00 : f32
    %99 = vector.broadcast %cst_43 : f32 to vector<32x16xf32>
    %100 = arith.cmpf ogt, %98, %99 : vector<32x16xf32>
    %cst_44 = arith.constant 0.00999999977 : f32
    %101 = vector.broadcast %cst_44 : f32 to vector<32x16xf32>
    %102 = arith.mulf %101, %98 : vector<32x16xf32>
    %103 = arith.select %100, %98, %102 : vector<32x16xi1>, vector<32x16xf32>
    %c2 = arith.constant 2 : index
    %c0_45 = arith.constant 0 : index
    %c0_46 = arith.constant 0 : index
    %104 = vector.load %arg4[%c2, %c0_45, %c0_46] : memref<7x32x32xf32, #tpu.memory_space<vmem>>, vector<1x32x32xf32>
    %105 = vector.shape_cast %104 : vector<1x32x32xf32> to vector<32x32xf32>
    %cst_47 = arith.constant dense<0.000000e+00> : vector<32x16xf32>
    %106 = tpu.matmul %105, %103, %cst_47 {dimension_numbers = #tpu.dot_dimension_numbers<[1], [0], [0], [1], [0, 0, 1, 1], [], []>} : vector<32x32xf32>, vector<32x16xf32>, vector<32x16xf32> -> vector<32x16xf32>
    %107 = vector.extract_strided_slice %61 {offsets = [64, 0], sizes = [32, 16], strides = [1, 1]} : vector<225x16xf32> to vector<32x16xf32>
    %108 = arith.addf %106, %107 : vector<32x16xf32>
    %c2_48 = arith.constant 2 : index
    %c0_49 = arith.constant 0 : index
    %c0_50 = arith.constant 0 : index
    %109 = vector.load %arg7[%c2_48, %c0_49, %c0_50] : memref<7x32x1xf32, #tpu.memory_space<vmem>>, vector<1x32x1xf32>
    %110 = vector.shape_cast %109 : vector<1x32x1xf32> to vector<32x1xf32>
    %111 = vector.broadcast %110 : vector<32x1xf32> to vector<32x16xf32>
    %112 = arith.addf %108, %111 : vector<32x16xf32>
    %c2_51 = arith.constant 2 : index
    %c0_52 = arith.constant 0 : index
    %c0_53 = arith.constant 0 : index
    %113 = vector.load %arg5[%c2_51, %c0_52, %c0_53] : memref<7x32x32xf32, #tpu.memory_space<vmem>>, vector<1x32x32xf32>
    %114 = vector.shape_cast %113 : vector<1x32x32xf32> to vector<32x32xf32>
    %cst_54 = arith.constant dense<0.000000e+00> : vector<32x16xf32>
    %115 = tpu.matmul %114, %85, %cst_54 {dimension_numbers = #tpu.dot_dimension_numbers<[1], [0], [0], [1], [0, 0, 1, 1], [], []>} : vector<32x32xf32>, vector<32x16xf32>, vector<32x16xf32> -> vector<32x16xf32>
    %116 = arith.addf %112, %115 : vector<32x16xf32>
    %cst_55 = arith.constant 0.000000e+00 : f32
    %117 = vector.broadcast %cst_55 : f32 to vector<32x16xf32>
    %118 = arith.cmpf ogt, %116, %117 : vector<32x16xf32>
    %cst_56 = arith.constant 0.00999999977 : f32
    %119 = vector.broadcast %cst_56 : f32 to vector<32x16xf32>
    %120 = arith.mulf %119, %116 : vector<32x16xf32>
    %121 = arith.select %118, %116, %120 : vector<32x16xi1>, vector<32x16xf32>
    %c3 = arith.constant 3 : index
    %c0_57 = arith.constant 0 : index
    %c0_58 = arith.constant 0 : index
    %122 = vector.load %arg4[%c3, %c0_57, %c0_58] : memref<7x32x32xf32, #tpu.memory_space<vmem>>, vector<1x32x32xf32>
    %123 = vector.shape_cast %122 : vector<1x32x32xf32> to vector<32x32xf32>
    %cst_59 = arith.constant dense<0.000000e+00> : vector<32x16xf32>
    %124 = tpu.matmul %123, %121, %cst_59 {dimension_numbers = #tpu.dot_dimension_numbers<[1], [0], [0], [1], [0, 0, 1, 1], [], []>} : vector<32x32xf32>, vector<32x16xf32>, vector<32x16xf32> -> vector<32x16xf32>
    %125 = vector.extract_strided_slice %61 {offsets = [96, 0], sizes = [32, 16], strides = [1, 1]} : vector<225x16xf32> to vector<32x16xf32>
    %126 = arith.addf %124, %125 : vector<32x16xf32>
    %c3_60 = arith.constant 3 : index
    %c0_61 = arith.constant 0 : index
    %c0_62 = arith.constant 0 : index
    %127 = vector.load %arg7[%c3_60, %c0_61, %c0_62] : memref<7x32x1xf32, #tpu.memory_space<vmem>>, vector<1x32x1xf32>
    %128 = vector.shape_cast %127 : vector<1x32x1xf32> to vector<32x1xf32>
    %129 = vector.broadcast %128 : vector<32x1xf32> to vector<32x16xf32>
    %130 = arith.addf %126, %129 : vector<32x16xf32>
    %c3_63 = arith.constant 3 : index
    %c0_64 = arith.constant 0 : index
    %c0_65 = arith.constant 0 : index
    %131 = vector.load %arg5[%c3_63, %c0_64, %c0_65] : memref<7x32x32xf32, #tpu.memory_space<vmem>>, vector<1x32x32xf32>
    %132 = vector.shape_cast %131 : vector<1x32x32xf32> to vector<32x32xf32>
    %cst_66 = arith.constant dense<0.000000e+00> : vector<32x16xf32>
    %133 = tpu.matmul %132, %103, %cst_66 {dimension_numbers = #tpu.dot_dimension_numbers<[1], [0], [0], [1], [0, 0, 1, 1], [], []>} : vector<32x32xf32>, vector<32x16xf32>, vector<32x16xf32> -> vector<32x16xf32>
    %134 = arith.addf %130, %133 : vector<32x16xf32>
    %cst_67 = arith.constant 0.000000e+00 : f32
    %135 = vector.broadcast %cst_67 : f32 to vector<32x16xf32>
    %136 = arith.cmpf ogt, %134, %135 : vector<32x16xf32>
    %cst_68 = arith.constant 0.00999999977 : f32
    %137 = vector.broadcast %cst_68 : f32 to vector<32x16xf32>
    %138 = arith.mulf %137, %134 : vector<32x16xf32>
    %139 = arith.select %136, %134, %138 : vector<32x16xi1>, vector<32x16xf32>
    %c4 = arith.constant 4 : index
    %c0_69 = arith.constant 0 : index
    %c0_70 = arith.constant 0 : index
    %140 = vector.load %arg4[%c4, %c0_69, %c0_70] : memref<7x32x32xf32, #tpu.memory_space<vmem>>, vector<1x32x32xf32>
    %141 = vector.shape_cast %140 : vector<1x32x32xf32> to vector<32x32xf32>
    %cst_71 = arith.constant dense<0.000000e+00> : vector<32x16xf32>
    %142 = tpu.matmul %141, %139, %cst_71 {dimension_numbers = #tpu.dot_dimension_numbers<[1], [0], [0], [1], [0, 0, 1, 1], [], []>} : vector<32x32xf32>, vector<32x16xf32>, vector<32x16xf32> -> vector<32x16xf32>
    %143 = vector.extract_strided_slice %61 {offsets = [128, 0], sizes = [32, 16], strides = [1, 1]} : vector<225x16xf32> to vector<32x16xf32>
    %144 = arith.addf %142, %143 : vector<32x16xf32>
    %c4_72 = arith.constant 4 : index
    %c0_73 = arith.constant 0 : index
    %c0_74 = arith.constant 0 : index
    %145 = vector.load %arg7[%c4_72, %c0_73, %c0_74] : memref<7x32x1xf32, #tpu.memory_space<vmem>>, vector<1x32x1xf32>
    %146 = vector.shape_cast %145 : vector<1x32x1xf32> to vector<32x1xf32>
    %147 = vector.broadcast %146 : vector<32x1xf32> to vector<32x16xf32>
    %148 = arith.addf %144, %147 : vector<32x16xf32>
    %c4_75 = arith.constant 4 : index
    %c0_76 = arith.constant 0 : index
    %c0_77 = arith.constant 0 : index
    %149 = vector.load %arg5[%c4_75, %c0_76, %c0_77] : memref<7x32x32xf32, #tpu.memory_space<vmem>>, vector<1x32x32xf32>
    %150 = vector.shape_cast %149 : vector<1x32x32xf32> to vector<32x32xf32>
    %cst_78 = arith.constant dense<0.000000e+00> : vector<32x16xf32>
    %151 = tpu.matmul %150, %121, %cst_78 {dimension_numbers = #tpu.dot_dimension_numbers<[1], [0], [0], [1], [0, 0, 1, 1], [], []>} : vector<32x32xf32>, vector<32x16xf32>, vector<32x16xf32> -> vector<32x16xf32>
    %152 = arith.addf %148, %151 : vector<32x16xf32>
    %cst_79 = arith.constant 0.000000e+00 : f32
    %153 = vector.broadcast %cst_79 : f32 to vector<32x16xf32>
    %154 = arith.cmpf ogt, %152, %153 : vector<32x16xf32>
    %cst_80 = arith.constant 0.00999999977 : f32
    %155 = vector.broadcast %cst_80 : f32 to vector<32x16xf32>
    %156 = arith.mulf %155, %152 : vector<32x16xf32>
    %157 = arith.select %154, %152, %156 : vector<32x16xi1>, vector<32x16xf32>
    %c5 = arith.constant 5 : index
    %c0_81 = arith.constant 0 : index
    %c0_82 = arith.constant 0 : index
    %158 = vector.load %arg4[%c5, %c0_81, %c0_82] : memref<7x32x32xf32, #tpu.memory_space<vmem>>, vector<1x32x32xf32>
    %159 = vector.shape_cast %158 : vector<1x32x32xf32> to vector<32x32xf32>
    %cst_83 = arith.constant dense<0.000000e+00> : vector<32x16xf32>
    %160 = tpu.matmul %159, %157, %cst_83 {dimension_numbers = #tpu.dot_dimension_numbers<[1], [0], [0], [1], [0, 0, 1, 1], [], []>} : vector<32x32xf32>, vector<32x16xf32>, vector<32x16xf32> -> vector<32x16xf32>
    %161 = vector.extract_strided_slice %61 {offsets = [160, 0], sizes = [32, 16], strides = [1, 1]} : vector<225x16xf32> to vector<32x16xf32>
    %162 = arith.addf %160, %161 : vector<32x16xf32>
    %c5_84 = arith.constant 5 : index
    %c0_85 = arith.constant 0 : index
    %c0_86 = arith.constant 0 : index
    %163 = vector.load %arg7[%c5_84, %c0_85, %c0_86] : memref<7x32x1xf32, #tpu.memory_space<vmem>>, vector<1x32x1xf32>
    %164 = vector.shape_cast %163 : vector<1x32x1xf32> to vector<32x1xf32>
    %165 = vector.broadcast %164 : vector<32x1xf32> to vector<32x16xf32>
    %166 = arith.addf %162, %165 : vector<32x16xf32>
    %c5_87 = arith.constant 5 : index
    %c0_88 = arith.constant 0 : index
    %c0_89 = arith.constant 0 : index
    %167 = vector.load %arg5[%c5_87, %c0_88, %c0_89] : memref<7x32x32xf32, #tpu.memory_space<vmem>>, vector<1x32x32xf32>
    %168 = vector.shape_cast %167 : vector<1x32x32xf32> to vector<32x32xf32>
    %cst_90 = arith.constant dense<0.000000e+00> : vector<32x16xf32>
    %169 = tpu.matmul %168, %139, %cst_90 {dimension_numbers = #tpu.dot_dimension_numbers<[1], [0], [0], [1], [0, 0, 1, 1], [], []>} : vector<32x32xf32>, vector<32x16xf32>, vector<32x16xf32> -> vector<32x16xf32>
    %170 = arith.addf %166, %169 : vector<32x16xf32>
    %cst_91 = arith.constant 0.000000e+00 : f32
    %171 = vector.broadcast %cst_91 : f32 to vector<32x16xf32>
    %172 = arith.cmpf ogt, %170, %171 : vector<32x16xf32>
    %cst_92 = arith.constant 0.00999999977 : f32
    %173 = vector.broadcast %cst_92 : f32 to vector<32x16xf32>
    %174 = arith.mulf %173, %170 : vector<32x16xf32>
    %175 = arith.select %172, %170, %174 : vector<32x16xi1>, vector<32x16xf32>
    %c6 = arith.constant 6 : index
    %c0_93 = arith.constant 0 : index
    %c0_94 = arith.constant 0 : index
    %176 = vector.load %arg4[%c6, %c0_93, %c0_94] : memref<7x32x32xf32, #tpu.memory_space<vmem>>, vector<1x32x32xf32>
    %177 = vector.shape_cast %176 : vector<1x32x32xf32> to vector<32x32xf32>
    %cst_95 = arith.constant dense<0.000000e+00> : vector<32x16xf32>
    %178 = tpu.matmul %177, %175, %cst_95 {dimension_numbers = #tpu.dot_dimension_numbers<[1], [0], [0], [1], [0, 0, 1, 1], [], []>} : vector<32x32xf32>, vector<32x16xf32>, vector<32x16xf32> -> vector<32x16xf32>
    %179 = vector.extract_strided_slice %61 {offsets = [192, 0], sizes = [32, 16], strides = [1, 1]} : vector<225x16xf32> to vector<32x16xf32>
    %180 = arith.addf %178, %179 : vector<32x16xf32>
    %c6_96 = arith.constant 6 : index
    %c0_97 = arith.constant 0 : index
    %c0_98 = arith.constant 0 : index
    %181 = vector.load %arg7[%c6_96, %c0_97, %c0_98] : memref<7x32x1xf32, #tpu.memory_space<vmem>>, vector<1x32x1xf32>
    %182 = vector.shape_cast %181 : vector<1x32x1xf32> to vector<32x1xf32>
    %183 = vector.broadcast %182 : vector<32x1xf32> to vector<32x16xf32>
    %184 = arith.addf %180, %183 : vector<32x16xf32>
    %c6_99 = arith.constant 6 : index
    %c0_100 = arith.constant 0 : index
    %c0_101 = arith.constant 0 : index
    %185 = vector.load %arg5[%c6_99, %c0_100, %c0_101] : memref<7x32x32xf32, #tpu.memory_space<vmem>>, vector<1x32x32xf32>
    %186 = vector.shape_cast %185 : vector<1x32x32xf32> to vector<32x32xf32>
    %cst_102 = arith.constant dense<0.000000e+00> : vector<32x16xf32>
    %187 = tpu.matmul %186, %157, %cst_102 {dimension_numbers = #tpu.dot_dimension_numbers<[1], [0], [0], [1], [0, 0, 1, 1], [], []>} : vector<32x32xf32>, vector<32x16xf32>, vector<32x16xf32> -> vector<32x16xf32>
    %188 = arith.addf %184, %187 : vector<32x16xf32>
    %cst_103 = arith.constant 0.000000e+00 : f32
    %189 = vector.broadcast %cst_103 : f32 to vector<32x16xf32>
    %190 = arith.cmpf ogt, %188, %189 : vector<32x16xf32>
    %cst_104 = arith.constant 0.00999999977 : f32
    %191 = vector.broadcast %cst_104 : f32 to vector<32x16xf32>
    %192 = arith.mulf %191, %188 : vector<32x16xf32>
    %193 = arith.select %190, %188, %192 : vector<32x16xi1>, vector<32x16xf32>
    %c0_105 = arith.constant 0 : index
    %c0_106 = arith.constant 0 : index
    %194 = vector.load %arg8[%c0_105, %c0_106] : memref<1x32xf32, #tpu.memory_space<vmem>>, vector<1x32xf32>
    %cst_107 = arith.constant dense<0.000000e+00> : vector<1x16xf32>
    %195 = tpu.matmul %194, %193, %cst_107 {dimension_numbers = #tpu.dot_dimension_numbers<[1], [0], [0], [1], [0, 0, 1, 1], [], []>} : vector<1x32xf32>, vector<32x16xf32>, vector<1x16xf32> -> vector<1x16xf32>
    %c0_108 = arith.constant 0 : index
    %c0_109 = arith.constant 0 : index
    %196 = vector.load %arg9[%c0_108, %c0_109] : memref<1x32xf32, #tpu.memory_space<vmem>>, vector<1x32xf32>
    %cst_110 = arith.constant dense<0.000000e+00> : vector<1x16xf32>
    %197 = tpu.matmul %196, %175, %cst_110 {dimension_numbers = #tpu.dot_dimension_numbers<[1], [0], [0], [1], [0, 0, 1, 1], [], []>} : vector<1x32xf32>, vector<32x16xf32>, vector<1x16xf32> -> vector<1x16xf32>
    %198 = arith.addf %195, %197 : vector<1x16xf32>
    %199 = vector.extract_strided_slice %61 {offsets = [224, 0], sizes = [1, 16], strides = [1, 1]} : vector<225x16xf32> to vector<1x16xf32>
    %200 = arith.addf %198, %199 : vector<1x16xf32>
    %c0_111 = arith.constant 0 : index
    %c0_112 = arith.constant 0 : index
    %201 = vector.load %arg10[%c0_111, %c0_112] : memref<1x1xf32, #tpu.memory_space<vmem>>, vector<1x1xf32>
    %202 = vector.broadcast %201 : vector<1x1xf32> to vector<1x16xf32>
    %203 = arith.addf %200, %202 : vector<1x16xf32>
    %204 = math.tanh %203 : vector<1x16xf32>
    %cst_113 = arith.constant 1.000000e+00 : f32
    %205 = vector.broadcast %cst_113 : f32 to vector<1x16xf32>
    %206 = arith.addf %204, %205 : vector<1x16xf32>
    %cst_114 = arith.constant 5.000000e-01 : f32
    %207 = vector.broadcast %cst_114 : f32 to vector<1x16xf32>
    %208 = arith.mulf %206, %207 : vector<1x16xf32>
    %c0_115 = arith.constant 0 : index
    %c0_116 = arith.constant 0 : index
    %209 = vector.load %arg11[%c0_115, %c0_116] : memref<1x16xf32, #tpu.memory_space<vmem>>, vector<1x16xf32>
    tpu.vector_store %arg11[%c0_115, %c0_116], %208 {strides = array<i32>} : memref<1x16xf32, #tpu.memory_space<vmem>>, vector<1x16xf32>,
    return
  }
  func.func @transform_0(%arg0: i32) -> (i32, i32) {
    %c0_i32 = arith.constant 0 : i32
    %c0_i32_0 = arith.constant 0 : i32
    return %c0_i32, %arg0 : i32, i32
  }
  func.func @transform_1(%arg0: i32) -> (i32, i32) {
    %c0_i32 = arith.constant 0 : i32
    %c0_i32_0 = arith.constant 0 : i32
    %c0_i32_1 = arith.constant 0 : i32
    return %c0_i32, %c0_i32_0 : i32, i32
  }
  func.func @transform_2(%arg0: i32) -> (i32, i32) {
    %c0_i32 = arith.constant 0 : i32
    %c0_i32_0 = arith.constant 0 : i32
    %c0_i32_1 = arith.constant 0 : i32
    return %c0_i32, %c0_i32_0 : i32, i32
  }
  func.func @transform_3(%arg0: i32) -> (i32, i32, i32) {
    %c0_i32 = arith.constant 0 : i32
    %c0_i32_0 = arith.constant 0 : i32
    %c0_i32_1 = arith.constant 0 : i32
    %c0_i32_2 = arith.constant 0 : i32
    return %c0_i32, %c0_i32_0, %c0_i32_1 : i32, i32, i32
  }
  func.func @transform_4(%arg0: i32) -> (i32, i32, i32) {
    %c0_i32 = arith.constant 0 : i32
    %c0_i32_0 = arith.constant 0 : i32
    %c0_i32_1 = arith.constant 0 : i32
    %c0_i32_2 = arith.constant 0 : i32
    return %c0_i32, %c0_i32_0, %c0_i32_1 : i32, i32, i32
  }
  func.func @transform_5(%arg0: i32) -> (i32, i32) {
    %c0_i32 = arith.constant 0 : i32
    %c0_i32_0 = arith.constant 0 : i32
    %c0_i32_1 = arith.constant 0 : i32
    return %c0_i32, %c0_i32_0 : i32, i32
  }
  func.func @transform_6(%arg0: i32) -> (i32, i32, i32) {
    %c0_i32 = arith.constant 0 : i32
    %c0_i32_0 = arith.constant 0 : i32
    %c0_i32_1 = arith.constant 0 : i32
    %c0_i32_2 = arith.constant 0 : i32
    return %c0_i32, %c0_i32_0, %c0_i32_1 : i32, i32, i32
  }
  func.func @transform_7(%arg0: i32) -> (i32, i32) {
    %c0_i32 = arith.constant 0 : i32
    %c0_i32_0 = arith.constant 0 : i32
    %c0_i32_1 = arith.constant 0 : i32
    return %c0_i32, %c0_i32_0 : i32, i32
  }
  func.func @transform_8(%arg0: i32) -> (i32, i32) {
    %c0_i32 = arith.constant 0 : i32
    %c0_i32_0 = arith.constant 0 : i32
    %c0_i32_1 = arith.constant 0 : i32
    return %c0_i32, %c0_i32_0 : i32, i32
  }
  func.func @transform_9(%arg0: i32) -> (i32, i32) {
    %c0_i32 = arith.constant 0 : i32
    %c0_i32_0 = arith.constant 0 : i32
    %c0_i32_1 = arith.constant 0 : i32
    return %c0_i32, %c0_i32_0 : i32, i32
  }
  func.func @transform_10(%arg0: i32) -> (i32, i32) {
    %c0_i32 = arith.constant 0 : i32
    %c0_i32_0 = arith.constant 0 : i32
    return %c0_i32, %arg0 : i32, i32
  }
}

</mosaic_0001>

<llo_original>
// kernel: tpu_custom_call.1
$region0: #{tpu_custom_call.1}
  #allocation0 [shape = 'u32[]', space=smem, size = 0x4, offset = 0x4, fixed_abs, tag = 'smem constant byte address 0x4 - core index']
  #allocation1 [shape = 'u32[144,128]{1,0:T(1,128)}', space=vmem, size = 0x12000, scoped, tag = 'internal scratch']
  #allocation2 [shape = 'f32[1,1]{1,0:T(1,128)S(1)}', space=vmem, size = 0x200, scoped, tag = 'scoped memory for tpu_custom_call.1']
  %s0 = inlined_call_operand.vmem [shape: f32[2,16], index: 0, kind: input, shape index: {}]
  %s1 = inlined_call_operand.vmem [shape: f32[32,18], index: 1, kind: input, shape index: {}]
  %s2 = inlined_call_operand.vmem [shape: f32[32,1], index: 2, kind: input, shape index: {}]
  %s3 = inlined_call_operand.vmem [shape: f32[7,32,32], index: 3, kind: input, shape index: {}]
  %s4 = inlined_call_operand.vmem [shape: f32[7,32,32], index: 4, kind: input, shape index: {}]
  %s5 = inlined_call_operand.vmem [shape: f32[225,18], index: 5, kind: input, shape index: {}]
  %s6 = inlined_call_operand.vmem [shape: f32[7,32,1], index: 6, kind: input, shape index: {}]
  %s7 = inlined_call_operand.vmem [shape: f32[1,32], index: 7, kind: input, shape index: {}]
  %s8 = inlined_call_operand.vmem [shape: f32[1,32], index: 8, kind: input, shape index: {}]
  %s9 = inlined_call_operand.<no memory space> [shape: f32[1,1], index: 9, kind: input, shape index: {}]
  %s10 = inlined_call_operand.hbm [shape: f32[1,16], index: 10, kind: output, shape index: {}]
  %s11 = sld [smem:[#allocation0]]
  $region50: #{tpu_custom_call.1} parent=0
    _
  %s13 = ssub.s32 1, %s11
  %s14 = scalar_select 0, %s13, %s11
  %v15 = vstv %s9
  %16 = vst [vmem:[#allocation2] sm:$0x1] %v15
  $region1: #{tpu_custom_call.1} parent=0
    #allocation3 [shape = 'u8[512]{0}', space=vmem, size = 0x400, scoped, tag = 'output window, operand 0, single buffered']
    #allocation4 [shape = 's32[1]{0}', space=sflag, size = 0x4, scoped, tag = 'scoped memory for tpu_custom_call.1']
    %17 = vsyncpa [#allocation4], 0
    // Predicated region
    $region2: #{tpu_custom_call.1} parent=1 // pred_check
      _
    $region3: #{tpu_custom_call.1} parent=1 // pred_check_branch
      %19 = sbr.rel (0) target = $region5
    $region4: #{tpu_custom_call.1} parent=1 // pred_region
      _
    $region5: #{tpu_custom_call.1} parent=1 // pred_fallthru
      _
    // Predicated region
    $region6: #{tpu_custom_call.1} parent=1 // pred_check
      _
    $region7: #{tpu_custom_call.1} parent=1 // pred_check_branch
      %21 = sbr.rel (0) target = $region9
    $region8: #{tpu_custom_call.1} parent=1 // pred_region
      _
    $region9: #{tpu_custom_call.1} parent=1 // pred_fallthru
      _
    // Predicated region
    $region10: #{tpu_custom_call.1} parent=1 // pred_check
      _
    $region11: #{tpu_custom_call.1} parent=1 // pred_check_branch
      %23 = sbr.rel (0) target = $region13
    $region12: #{tpu_custom_call.1} parent=1 // pred_region
      _
    $region13: #{tpu_custom_call.1} parent=1 // pred_fallthru
      _
    // Predicated region
    $region14: #{tpu_custom_call.1} parent=1 // pred_check
      _
    $region15: #{tpu_custom_call.1} parent=1 // pred_check_branch
      %25 = sbr.rel (0) target = $region17
    $region16: #{tpu_custom_call.1} parent=1 // pred_region
      _
    $region17: #{tpu_custom_call.1} parent=1 // pred_fallthru
      _
    // Predicated region
    $region18: #{tpu_custom_call.1} parent=1 // pred_check
      _
    $region19: #{tpu_custom_call.1} parent=1 // pred_check_branch
      %27 = sbr.rel (0) target = $region21
    $region20: #{tpu_custom_call.1} parent=1 // pred_region
      _
    $region21: #{tpu_custom_call.1} parent=1 // pred_fallthru
      _
    // Predicated region
    $region22: #{tpu_custom_call.1} parent=1 // pred_check
      _
    $region23: #{tpu_custom_call.1} parent=1 // pred_check_branch
      %29 = sbr.rel (0) target = $region25
    $region24: #{tpu_custom_call.1} parent=1 // pred_region
      _
    $region25: #{tpu_custom_call.1} parent=1 // pred_fallthru
      _
    // Predicated region
    $region26: #{tpu_custom_call.1} parent=1 // pred_check
      _
    $region27: #{tpu_custom_call.1} parent=1 // pred_check_branch
      %31 = sbr.rel (0) target = $region29
    $region28: #{tpu_custom_call.1} parent=1 // pred_region
      _
    $region29: #{tpu_custom_call.1} parent=1 // pred_fallthru
      _
    // Predicated region
    $region30: #{tpu_custom_call.1} parent=1 // pred_check
      _
    $region31: #{tpu_custom_call.1} parent=1 // pred_check_branch
      %33 = sbr.rel (0) target = $region33
    $region32: #{tpu_custom_call.1} parent=1 // pred_region
      _
    $region33: #{tpu_custom_call.1} parent=1 // pred_fallthru
      _
    // Predicated region
    $region34: #{tpu_custom_call.1} parent=1 // pred_check
      _
    $region35: #{tpu_custom_call.1} parent=1 // pred_check_branch
      %35 = sbr.rel (0) target = $region37
    $region36: #{tpu_custom_call.1} parent=1 // pred_region
      _
    $region37: #{tpu_custom_call.1} parent=1 // pred_fallthru
      _
    // Predicated region
    $region38: #{tpu_custom_call.1} parent=1 // pred_check
      _
    $region39: #{tpu_custom_call.1} parent=1 // pred_check_branch
      %37 = sbr.rel (0) target = $region41
    $region40: #{tpu_custom_call.1} parent=1 // pred_region
      _
    $region41: #{tpu_custom_call.1} parent=1 // pred_fallthru
      _
    %v38 = vld [vmem:[%s0] sm:$0x3]
    %v39 = vlaneseq
    %v40 = vshrl.u32 %v39, 7
    %v41 = vadd.s32 %v40, 8
    %v42 = vadd.s32 %v40, 16
    %vm43 = vcmp.lt.s32.totalorder %v40, 0
    %v44 = vsub.s32 0, %v40
    %v45 = vsel %vm43, %v44, %v40
    %v46 = vmul.u32.u64.compose %v45, 3817748708
    %v47 = vextract.low.u32 %v46
    %v48 = vextract.high.u32 %v46
    %v49 = vshrl.u32 %v48, 3
    %v50 = vmul.u32 %v49, 9
    %v51 = vsub.s32 %v45, %v50
    %v52 = vsub.s32 0, %v51
    %v53 = vsel %vm43, %v52, %v51
    %vm54 = vcmp.lt.s32.totalorder %v41, 0
    %v55 = vsub.s32 0, %v41
    %v56 = vsel %vm54, %v55, %v41
    %v57 = vmul.u32.u64.compose %v56, 3817748708
    %v58 = vextract.low.u32 %v57
    %v59 = vextract.high.u32 %v57
    %v60 = vshrl.u32 %v59, 3
    %v61 = vmul.u32 %v60, 9
    %v62 = vsub.s32 %v56, %v61
    %v63 = vsub.s32 0, %v62
    %v64 = vsel %vm54, %v63, %v62
    %vm65 = vcmp.lt.s32.totalorder %v42, 0
    %v66 = vsub.s32 0, %v42
    %v67 = vsel %vm65, %v66, %v42
    %v68 = vmul.u32.u64.compose %v67, 3817748708
    %v69 = vextract.low.u32 %v68
    %v70 = vextract.high.u32 %v68
    %v71 = vshrl.u32 %v70, 3
    %v72 = vmul.u32 %v71, 9
    %v73 = vsub.s32 %v67, %v72
    %v74 = vsub.s32 0, %v73
    %v75 = vsel %vm65, %v74, %v73
    %vm76 = vcmp.ne.s32.totalorder %v53, 0
    %vm77 = vcmp.ne.s32.totalorder %v64, 0
    %vm78 = vcmp.ne.s32.totalorder %v75, 0
    %vm79 = vcmp.lt.s32.totalorder %v53, 0
    %vm80 = vcmp.lt.s32.totalorder %v64, 0
    %vm81 = vcmp.lt.s32.totalorder %v75, 0
    %vm82 = vmand %vm79, %vm76
    %vm83 = vmand %vm80, %vm77
    %vm84 = vmand %vm81, %vm78
    %v85 = vadd.s32 %v53, 9
    %v86 = vadd.s32 %v64, 9
    %v87 = vadd.s32 %v75, 9
    %v88 = vsel %vm82, %v85, %v53
    %v89 = vsel %vm83, %v86, %v64
    %v90 = vsel %vm84, %v87, %v75
    %vm91 = vcmp.lt.s32.totalorder %v88, 0
    %v92 = vsub.s32 0, %v88
    %v93 = vsel %vm91, %v92, %v88
    %v94 = vshrl.u32 %v93, 2
    %v95 = vand.u32 %v93, 3
    %v96 = vsub.s32 0, %v95
    %v97 = vsel %vm91, %v96, %v95
    %vm98 = vcmp.lt.s32.totalorder %v89, 0
    %v99 = vsub.s32 0, %v89
    %v100 = vsel %vm98, %v99, %v89
    %v101 = vshrl.u32 %v100, 2
    %v102 = vand.u32 %v100, 3
    %v103 = vsub.s32 0, %v102
    %v104 = vsel %vm98, %v103, %v102
    %vm105 = vcmp.lt.s32.totalorder %v90, 0
    %v106 = vsub.s32 0, %v90
    %v107 = vsel %vm105, %v106, %v90
    %v108 = vshrl.u32 %v107, 2
    %v109 = vand.u32 %v107, 3
    %v110 = vsub.s32 0, %v109
    %v111 = vsel %vm105, %v110, %v109
    %vm112 = vcmp.ne.s32.totalorder %v97, 0
    %vm113 = vcmp.ne.s32.totalorder %v104, 0
    %vm114 = vcmp.ne.s32.totalorder %v111, 0
    %vm115 = vcmp.lt.s32.totalorder %v97, 0
    %vm116 = vcmp.lt.s32.totalorder %v104, 0
    %vm117 = vcmp.lt.s32.totalorder %v111, 0
    %vm118 = vmand %vm115, %vm112
    %vm119 = vmand %vm116, %vm113
    %vm120 = vmand %vm117, %vm114
    %v121 = vadd.s32 %v97, 4
    %v122 = vadd.s32 %v104, 4
    %v123 = vadd.s32 %v111, 4
    %v124 = vsel %vm118, %v121, %v97
    %v125 = vsel %vm119, %v122, %v104
    %v126 = vsel %vm120, %v123, %v111
    %v127 = vadd.s32 %v124, 1
    %v128 = vadd.s32 %v125, 1
    %v129 = vadd.s32 %v126, 1
    %v130 = vcvt.s32.f32 %v127
    %v131 = vcvt.s32.f32 %v128
    %v132 = vcvt.s32.f32 %v129
    %vm133 = vcmp.ge.s32.totalorder %v88, 4
    %vm134 = vcmp.ge.s32.totalorder %v89, 4
    %vm135 = vcmp.ge.s32.totalorder %v90, 4
    %vm136 = vcmp.lt.s32.totalorder %v88, 8
    %vm137 = vcmp.lt.s32.totalorder %v89, 8
    %vm138 = vcmp.lt.s32.totalorder %v90, 8
    %vm139 = vmand %vm133, %vm136
    %vm140 = vmand %vm134, %vm137
    %vm141 = vmand %vm135, %vm138
    %v142 = vsel %vm139, 1.5707964, 0.0
    %v143 = vsel %vm140, 1.5707964, 0.0
    %v144 = vsel %vm141, 1.5707964, 0.0
    %vm145 = vcmp.lt.s32.totalorder %v40, 9
    %vm146 = vcmp.lt.s32.totalorder %v41, 9
    %vm147 = vcmp.lt.s32.totalorder %v42, 9
    %v148 = vlaneseq
    %v149 = vshrl.u32 %v148, 7
    %v150 = vsub.s32 0, %v149
    %v151 = vrot.slane %v38, %v150
    %v152 = vlaneseq
    %v153 = vshrl.u32 %v152, 7
    %v154 = vsub.s32 1, %v153
    %v155 = vrot.slane %v38, %v154
    %v156 = vsel %vm145, %v151, %v155
    %v157 = vsel %vm146, %v151, %v155
    %v158 = vsel %vm147, %v151, %v155
    %vm159 = vcmp.eq.s32.totalorder %v88, 8
    %vm160 = vcmp.eq.s32.totalorder %v89, 8
    %vm161 = vcmp.eq.s32.totalorder %v90, 8
    %v162 = vmul.f32 %v130, %v156
    %v163 = vmul.f32 %v131, %v157
    %v164 = vmul.f32 %v132, %v158
    %v165 = vadd.f32 %v162, %v142
    %v166 = vadd.f32 %v163, %v143
    %v167 = vadd.f32 %v164, %v144
    %v168 = vand.u32 2147483647, %v165
    %vm169 = vcmp.le.f32.partialorder %v168, 0.7853982
    %vm170 = vcmp.lt.s32.totalorder %v165, 0
    %v171 = vand.u32 %v165, 2139095040
    %v172 = vshrl.u32 %v171, 23
    %v173 = vsub.s32 %v172, 127
    %v174 = vand.u32 2147483647, %v165
    %v175 = vand.u32 %v174, 8388607
    %v176 = vor.u32 %v175, 8388608
    %v177 = vsub.s32 0, %v176
    %v178 = vadd.s32 %v173, 1
    %vm179 = vcmp.gt.s32.totalorder %v178, 0
    %v180 = vsel %vm179, %v178, 0
    %v181 = vshrl.u32 %v180, 5
    %v182 = vand.u32 %v180, 31
    %v183 = vsub.s32 32, %v182
    %v184 = vshrl.u32 683565275, %v183
    %v185 = vshll.u32 683565275, %v182
    %v186 = vshrl.u32 2475754826, %v183
    %v187 = vor.u32 %v185, %v186
    %v188 = vshll.u32 2475754826, %v182
    %v189 = vshrl.u32 2131351028, %v183
    %v190 = vor.u32 %v188, %v189
    %v191 = vshll.u32 2131351028, %v182
    %v192 = vshrl.u32 2102212464, %v183
    %v193 = vor.u32 %v191, %v192
    %v194 = vshll.u32 2102212464, %v182
    %v195 = vshrl.u32 920167782, %v183
    %v196 = vor.u32 %v194, %v195
    %v197 = vshll.u32 920167782, %v182
    %v198 = vshrl.u32 1326507024, %v183
    %v199 = vor.u32 %v197, %v198
    %vm200 = vcmp.lt.s32.totalorder %v181, 1
    %vm201 = vcmp.lt.s32.totalorder %v181, 2
    %vm202 = vcmp.lt.s32.totalorder %v181, 3
    %vm203 = vcmp.lt.s32.totalorder %v181, 4
    %v204 = vsel %vm200, %v184, %v187
    %v205 = vsel %vm203, %v193, 2102212464
    %v206 = vsel %vm202, %v190, %v205
    %v207 = vsel %vm201, %v204, %v206
    %v208 = vsel %vm200, %v187, %v190
    %v209 = vsel %vm203, %v196, 920167782
    %v210 = vsel %vm202, %v193, %v209
    %v211 = vsel %vm201, %v208, %v210
    %v212 = vsel %vm200, %v190, %v193
    %v213 = vsel %vm203, %v199, 1326507024
    %v214 = vsel %vm202, %v196, %v213
    %v215 = vsel %vm201, %v212, %v214
    %v216 = vshll.u32 %v176, 8
    %v217 = vmul.u32.u64.compose %v216, %v215
    %v218 = vextract.low.u32 %v217
    %v219 = vextract.high.u32 %v217
    %v220 = vmul.u32.u64.compose %v216, %v211
    %v221 = vextract.low.u32 %v220
    %v222 = vextract.high.u32 %v220
    %v223 = vmul.u32 %v216, %v207
    %v224 = vadd.s32 %v219, %v221
    %vm225 = vc.u32 %v219, %v221
    %v226 = vadd.s32 %v222, 1
    %v227 = vsel %vm225, %v226, %v222
    %v228 = vadd.s32 %v223, %v227
    %v229 = vadd.s32 %v228, 536870912
    %v230 = vshrl.u32 %v229, 30
    %v231 = vshll.u32 %v230, 30
    %v232 = vsub.s32 %v228, %v231
    %vm233 = vcmp.lt.s32.totalorder %v232, 0
    %v234 = vsub.s32 0, %v232
    %v235 = vsel %vm233, %v234, %v232
    %v236 = vclz %v235
    %v237 = vsub.s32 %v236, 2
    %vm238 = vcmp.gt.s32.totalorder 0, %v237
    %v239 = vsel %vm238, 0, %v237
    %v240 = vsub.s32 32, %v239
    %v241 = vshll.u32 %v232, %v239
    %v242 = vshrl.u32 %v224, %v240
    %v243 = vor.u32 %v241, %v242
    %v244 = vsub.s32 4294967266, %v239
    %v245 = vadd.s32 %v244, 127
    %v246 = vshll.u32 %v245, 23
    %v247 = vor.u32 4788187, %v246
    %v248 = vand.u32 2147483647, %v247
    %v250 = vcvt.s32.f32 %v243
    %v251 = vmul.f32 %v250, %v248
    %v252 = vxor.u32 %v251, 2147483648
    %v253 = vsel %vm170, %v252, %v251
    %v254 = vsub.s32 4, %v230
    %v255 = vsel %vm170, %v254, %v230
    %v256 = vsel %vm169, %v165, %v253
    %v257 = vsel %vm169, 0, %v255
    %v258 = vcosq.f32.pop %v256
    %v259 = vsinq.f32.pop %v256
    %vm260 = vweird.f32 %v165
    %v261 = vadd.s32 %v257, 3
    %v262 = vand.u32 %v261, 3
    %vm263 = vcmp.lt.s32.totalorder %v262, 2
    %vm264 = vcmp.eq.s32.totalorder %v262, 0
    %v265 = vxor.u32 %v259, 2147483648
    %v266 = vsel %vm264, %v258, %v265
    %vm267 = vcmp.eq.s32.totalorder %v262, 2
    %v268 = vxor.u32 %v258, 2147483648
    %v269 = vsel %vm267, %v268, %v259
    %v270 = vsel %vm263, %v266, %v269
    %v271 = vsel %vm260, nan, %v270
    %v272 = vand.u32 2147483647, %v166
    %vm273 = vcmp.le.f32.partialorder %v272, 0.7853982
    %vm274 = vcmp.lt.s32.totalorder %v166, 0
    %v275 = vand.u32 %v166, 2139095040
    %v276 = vshrl.u32 %v275, 23
    %v277 = vsub.s32 %v276, 127
    %v278 = vand.u32 2147483647, %v166
    %v279 = vand.u32 %v278, 8388607
    %v280 = vor.u32 %v279, 8388608
    %v281 = vsub.s32 0, %v280
    %v282 = vadd.s32 %v277, 1
    %vm283 = vcmp.gt.s32.totalorder %v282, 0
    %v284 = vsel %vm283, %v282, 0
    %v285 = vshrl.u32 %v284, 5
    %v286 = vand.u32 %v284, 31
    %v287 = vsub.s32 32, %v286
    %v288 = vshrl.u32 683565275, %v287
    %v289 = vshll.u32 683565275, %v286
    %v290 = vshrl.u32 2475754826, %v287
    %v291 = vor.u32 %v289, %v290
    %v292 = vshll.u32 2475754826, %v286
    %v293 = vshrl.u32 2131351028, %v287
    %v294 = vor.u32 %v292, %v293
    %v295 = vshll.u32 2131351028, %v286
    %v296 = vshrl.u32 2102212464, %v287
    %v297 = vor.u32 %v295, %v296
    %v298 = vshll.u32 2102212464, %v286
    %v299 = vshrl.u32 920167782, %v287
    %v300 = vor.u32 %v298, %v299
    %v301 = vshll.u32 920167782, %v286
    %v302 = vshrl.u32 1326507024, %v287
    %v303 = vor.u32 %v301, %v302
    %vm304 = vcmp.lt.s32.totalorder %v285, 1
    %vm305 = vcmp.lt.s32.totalorder %v285, 2
    %vm306 = vcmp.lt.s32.totalorder %v285, 3
    %vm307 = vcmp.lt.s32.totalorder %v285, 4
    %v308 = vsel %vm304, %v288, %v291
    %v309 = vsel %vm307, %v297, 2102212464
    %v310 = vsel %vm306, %v294, %v309
    %v311 = vsel %vm305, %v308, %v310
    %v312 = vsel %vm304, %v291, %v294
    %v313 = vsel %vm307, %v300, 920167782
    %v314 = vsel %vm306, %v297, %v313
    %v315 = vsel %vm305, %v312, %v314
    %v316 = vsel %vm304, %v294, %v297
    %v317 = vsel %vm307, %v303, 1326507024
    %v318 = vsel %vm306, %v300, %v317
    %v319 = vsel %vm305, %v316, %v318
    %v320 = vshll.u32 %v280, 8
    %v321 = vmul.u32.u64.compose %v320, %v319
    %v322 = vextract.low.u32 %v321
    %v323 = vextract.high.u32 %v321
    %v324 = vmul.u32.u64.compose %v320, %v315
    %v325 = vextract.low.u32 %v324
    %v326 = vextract.high.u32 %v324
    %v327 = vmul.u32 %v320, %v311
    %v328 = vadd.s32 %v323, %v325
    %vm329 = vc.u32 %v323, %v325
    %v330 = vadd.s32 %v326, 1
    %v331 = vsel %vm329, %v330, %v326
    %v332 = vadd.s32 %v327, %v331
    %v333 = vadd.s32 %v332, 536870912
    %v334 = vshrl.u32 %v333, 30
    %v335 = vshll.u32 %v334, 30
    %v336 = vsub.s32 %v332, %v335
    %vm337 = vcmp.lt.s32.totalorder %v336, 0
    %v338 = vsub.s32 0, %v336
    %v339 = vsel %vm337, %v338, %v336
    %v340 = vclz %v339
    %v341 = vsub.s32 %v340, 2
    %vm342 = vcmp.gt.s32.totalorder 0, %v341
    %v343 = vsel %vm342, 0, %v341
    %v344 = vsub.s32 32, %v343
    %v345 = vshll.u32 %v336, %v343
    %v346 = vshrl.u32 %v328, %v344
    %v347 = vor.u32 %v345, %v346
    %v348 = vsub.s32 4294967266, %v343
    %v349 = vadd.s32 %v348, 127
    %v350 = vshll.u32 %v349, 23
    %v351 = vor.u32 4788187, %v350
    %v352 = vand.u32 2147483647, %v351
    %v354 = vcvt.s32.f32 %v347
    %v355 = vmul.f32 %v354, %v352
    %v356 = vxor.u32 %v355, 2147483648
    %v357 = vsel %vm274, %v356, %v355
    %v358 = vsub.s32 4, %v334
    %v359 = vsel %vm274, %v358, %v334
    %v360 = vsel %vm273, %v166, %v357
    %v361 = vsel %vm273, 0, %v359
    %v362 = vcosq.f32.pop %v360
    %v363 = vsinq.f32.pop %v360
    %vm364 = vweird.f32 %v166
    %v365 = vadd.s32 %v361, 3
    %v366 = vand.u32 %v365, 3
    %vm367 = vcmp.lt.s32.totalorder %v366, 2
    %vm368 = vcmp.eq.s32.totalorder %v366, 0
    %v369 = vxor.u32 %v363, 2147483648
    %v370 = vsel %vm368, %v362, %v369
    %vm371 = vcmp.eq.s32.totalorder %v366, 2
    %v372 = vxor.u32 %v362, 2147483648
    %v373 = vsel %vm371, %v372, %v363
    %v374 = vsel %vm367, %v370, %v373
    %v375 = vsel %vm364, nan, %v374
    %v376 = vand.u32 2147483647, %v167
    %vm377 = vcmp.le.f32.partialorder %v376, 0.7853982
    %vm378 = vcmp.lt.s32.totalorder %v167, 0
    %v379 = vand.u32 %v167, 2139095040
    %v380 = vshrl.u32 %v379, 23
    %v381 = vsub.s32 %v380, 127
    %v382 = vand.u32 2147483647, %v167
    %v383 = vand.u32 %v382, 8388607
    %v384 = vor.u32 %v383, 8388608
    %v385 = vsub.s32 0, %v384
    %v386 = vadd.s32 %v381, 1
    %vm387 = vcmp.gt.s32.totalorder %v386, 0
    %v388 = vsel %vm387, %v386, 0
    %v389 = vshrl.u32 %v388, 5
    %v390 = vand.u32 %v388, 31
    %v391 = vsub.s32 32, %v390
    %v392 = vshrl.u32 683565275, %v391
    %v393 = vshll.u32 683565275, %v390
    %v394 = vshrl.u32 2475754826, %v391
    %v395 = vor.u32 %v393, %v394
    %v396 = vshll.u32 2475754826, %v390
    %v397 = vshrl.u32 2131351028, %v391
    %v398 = vor.u32 %v396, %v397
    %v399 = vshll.u32 2131351028, %v390
    %v400 = vshrl.u32 2102212464, %v391
    %v401 = vor.u32 %v399, %v400
    %v402 = vshll.u32 2102212464, %v390
    %v403 = vshrl.u32 920167782, %v391
    %v404 = vor.u32 %v402, %v403
    %v405 = vshll.u32 920167782, %v390
    %v406 = vshrl.u32 1326507024, %v391
    %v407 = vor.u32 %v405, %v406
    %vm408 = vcmp.lt.s32.totalorder %v389, 1
    %vm409 = vcmp.lt.s32.totalorder %v389, 2
    %vm410 = vcmp.lt.s32.totalorder %v389, 3
    %vm411 = vcmp.lt.s32.totalorder %v389, 4
    %v412 = vsel %vm408, %v392, %v395
    %v413 = vsel %vm411, %v401, 2102212464
    %v414 = vsel %vm410, %v398, %v413
    %v415 = vsel %vm409, %v412, %v414
    %v416 = vsel %vm408, %v395, %v398
    %v417 = vsel %vm411, %v404, 920167782
    %v418 = vsel %vm410, %v401, %v417
    %v419 = vsel %vm409, %v416, %v418
    %v420 = vsel %vm408, %v398, %v401
    %v421 = vsel %vm411, %v407, 1326507024
    %v422 = vsel %vm410, %v404, %v421
    %v423 = vsel %vm409, %v420, %v422
    %v424 = vshll.u32 %v384, 8
    %v425 = vmul.u32.u64.compose %v424, %v423
    %v426 = vextract.low.u32 %v425
    %v427 = vextract.high.u32 %v425
    %v428 = vmul.u32.u64.compose %v424, %v419
    %v429 = vextract.low.u32 %v428
    %v430 = vextract.high.u32 %v428
    %v431 = vmul.u32 %v424, %v415
    %v432 = vadd.s32 %v427, %v429
    %vm433 = vc.u32 %v427, %v429
    %v434 = vadd.s32 %v430, 1
    %v435 = vsel %vm433, %v434, %v430
    %v436 = vadd.s32 %v431, %v435
    %v437 = vadd.s32 %v436, 536870912
    %v438 = vshrl.u32 %v437, 30
    %v439 = vshll.u32 %v438, 30
    %v440 = vsub.s32 %v436, %v439
    %vm441 = vcmp.lt.s32.totalorder %v440, 0
    %v442 = vsub.s32 0, %v440
    %v443 = vsel %vm441, %v442, %v440
    %v444 = vclz %v443
    %v445 = vsub.s32 %v444, 2
    %vm446 = vcmp.gt.s32.totalorder 0, %v445
    %v447 = vsel %vm446, 0, %v445
    %v448 = vsub.s32 32, %v447
    %v449 = vshll.u32 %v440, %v447
    %v450 = vshrl.u32 %v432, %v448
    %v451 = vor.u32 %v449, %v450
    %v452 = vsub.s32 4294967266, %v447
    %v453 = vadd.s32 %v452, 127
    %v454 = vshll.u32 %v453, 23
    %v455 = vor.u32 4788187, %v454
    %v456 = vand.u32 2147483647, %v455
    %v458 = vcvt.s32.f32 %v451
    %v459 = vmul.f32 %v458, %v456
    %v460 = vxor.u32 %v459, 2147483648
    %v461 = vsel %vm378, %v460, %v459
    %v462 = vsub.s32 4, %v438
    %v463 = vsel %vm378, %v462, %v438
    %v464 = vsel %vm377, %v167, %v461
    %v465 = vsel %vm377, 0, %v463
    %v466 = vcosq.f32.pop %v464
    %v467 = vsinq.f32.pop %v464
    %vm468 = vweird.f32 %v167
    %v469 = vadd.s32 %v465, 3
    %v470 = vand.u32 %v469, 3
    %vm471 = vcmp.lt.s32.totalorder %v470, 2
    %vm472 = vcmp.eq.s32.totalorder %v470, 0
    %v473 = vxor.u32 %v467, 2147483648
    %v474 = vsel %vm472, %v466, %v473
    %vm475 = vcmp.eq.s32.totalorder %v470, 2
    %v476 = vxor.u32 %v466, 2147483648
    %v477 = vsel %vm475, %v476, %v467
    %v478 = vsel %vm471, %v474, %v477
    %v479 = vsel %vm468, nan, %v478
    %v480 = vsel %vm159, %v156, %v271
    %v481 = vsel %vm160, %v157, %v375
    %v482 = vsel %vm161, %v158, %v479
    %v483 = vld [vmem:[%s5] sm:$0xff]
    %v484 = vld [vmem:[%s5 + $0x8] sm:$0xff]
    %v485 = vld [vmem:[%s5 + $0x10] sm:$0xff]
    %v486 = vld [vmem:[%s5 + $0x18] sm:$0xff]
    %v487 = vld [vmem:[%s5 + $0x20] sm:$0xff]
    %v488 = vld [vmem:[%s5 + $0x28] sm:$0xff]
    %v489 = vld [vmem:[%s5 + $0x30] sm:$0xff]
    %v490 = vld [vmem:[%s5 + $0x38] sm:$0xff]
    %v491 = vld [vmem:[%s5 + $0x40] sm:$0xff]
    %v492 = vld [vmem:[%s5 + $0x48] sm:$0xff]
    %v493 = vld [vmem:[%s5 + $0x50] sm:$0xff]
    %v494 = vld [vmem:[%s5 + $0x58] sm:$0xff]
    %v495 = vld [vmem:[%s5 + $0x60] sm:$0xff]
    %v496 = vld [vmem:[%s5 + $0x68] sm:$0xff]
    %v497 = vld [vmem:[%s5 + $0x70] sm:$0xff]
    %v498 = vld [vmem:[%s5 + $0x78] sm:$0xff]
    %v499 = vld [vmem:[%s5 + $0x80] sm:$0xff]
    %v500 = vld [vmem:[%s5 + $0x88] sm:$0xff]
    %v501 = vld [vmem:[%s5 + $0x90] sm:$0xff]
    %v502 = vld [vmem:[%s5 + $0x98] sm:$0xff]
    %v503 = vld [vmem:[%s5 + $0xa0] sm:$0xff]
    %v504 = vld [vmem:[%s5 + $0xa8] sm:$0xff]
    %v505 = vld [vmem:[%s5 + $0xb0] sm:$0xff]
    %v506 = vld [vmem:[%s5 + $0xb8] sm:$0xff]
    %v507 = vld [vmem:[%s5 + $0xc0] sm:$0xff]
    %v508 = vld [vmem:[%s5 + $0xc8] sm:$0xff]
    %v509 = vld [vmem:[%s5 + $0xd0] sm:$0xff]
    %v510 = vld [vmem:[%s5 + $0xd8] sm:$0xff]
    %v511 = vld [vmem:[%s5 + $0xe0] sm:$0x1]
    %vm512 = vcmask 146432
    %v514 = vsel %vm512, %v483, 0
    %v517 = vsel %vm512, %v484, 0
    %v520 = vsel %vm512, %v485, 0
    %v523 = vsel %vm512, %v486, 0
    %v526 = vsel %vm512, %v487, 0
    %v529 = vsel %vm512, %v488, 0
    %v532 = vsel %vm512, %v489, 0
    %v535 = vsel %vm512, %v490, 0
    %v538 = vsel %vm512, %v491, 0
    %v541 = vsel %vm512, %v492, 0
    %v544 = vsel %vm512, %v493, 0
    %v547 = vsel %vm512, %v494, 0
    %v550 = vsel %vm512, %v495, 0
    %v553 = vsel %vm512, %v496, 0
    %v556 = vsel %vm512, %v497, 0
    %v559 = vsel %vm512, %v498, 0
    %v562 = vsel %vm512, %v499, 0
    %v565 = vsel %vm512, %v500, 0
    %v568 = vsel %vm512, %v501, 0
    %v571 = vsel %vm512, %v502, 0
    %v574 = vsel %vm512, %v503, 0
    %v577 = vsel %vm512, %v504, 0
    %v580 = vsel %vm512, %v505, 0
    %v583 = vsel %vm512, %v506, 0
    %v586 = vsel %vm512, %v507, 0
    %v589 = vsel %vm512, %v508, 0
    %v592 = vsel %vm512, %v509, 0
    %v595 = vsel %vm512, %v510, 0
    %v598 = vsel %vm512, %v511, 0
    %vm600 = vcmask 1041408
    %v602 = vsel %vm600, %v482, 0
    %604 = vmatprep.subr.mxu0 0.0
    %605 = vmatpush1.msra.mxu0 %v480
    %606 = vmatprep.subr.mxu0 0.0
    %607 = vmatpush1.msra.mxu0 %v481
    %608 = vmatprep.subr.mxu0 0.0
    %609 = vmatpush1.msra.mxu0 %v602
    %610 = vmatprep.subr.mxu0 0.0
    %611 = vmatpush1.msra.mxu0 0.0
    %612 = vmatprep.subr.mxu0 0.0
    %613 = vmatpush1.msra.mxu0 0.0
    %614 = vmatprep.subr.mxu0 0.0
    %615 = vmatpush1.msra.mxu0 0.0
    %616 = vmatprep.subr.mxu0 0.0
    %617 = vmatpush1.msra.mxu0 0.0
    %618 = vmatprep.subr.mxu0 0.0
    %619 = vmatpush1.msra.mxu0 0.0
    %620 = vmatprep.subr.mxu0 0.0
    %621 = vmatpush1.msra.mxu0 0.0
    %622 = vmatprep.subr.mxu0 0.0
    %623 = vmatpush1.msra.mxu0 0.0
    %624 = vmatprep.subr.mxu0 0.0
    %625 = vmatpush1.msra.mxu0 0.0
    %626 = vmatprep.subr.mxu0 0.0
    %627 = vmatpush1.msra.mxu0 0.0
    %628 = vmatprep.subr.mxu0 0.0
    %629 = vmatpush1.msra.mxu0 0.0
    %630 = vmatprep.subr.mxu0 0.0
    %631 = vmatpush1.msra.mxu0 0.0
    %632 = vmatprep.subr.mxu0 0.0
    %633 = vmatpush1.msra.mxu0 0.0
    %634 = vmatprep.subr.mxu0 0.0
    %635 = vmatpush1.msra.mxu0 0.0
    %636 = vmatprep.subr.mxu0 0.0
    %637 = vmatpush1.msra.mxu0 0.0
    %638 = vmatprep.subr.mxu0 0.0
    %639 = vmatpush1.msra.mxu0 0.0
    %640 = vmatprep.subr.mxu0 0.0
    %641 = vmatpush1.msra.mxu0 0.0
    %642 = vmatprep.subr.mxu0 0.0
    %643 = vmatpush1.msra.mxu0 0.0
    %644 = vmatprep.subr.mxu0 0.0
    %645 = vmatpush1.msra.mxu0 0.0
    %646 = vmatprep.subr.mxu0 0.0
    %647 = vmatpush1.msra.mxu0 0.0
    %648 = vmatprep.subr.mxu0 0.0
    %649 = vmatpush1.msra.mxu0 0.0
    %650 = vmatprep.subr.mxu0 0.0
    %651 = vmatpush1.msra.mxu0 0.0
    %652 = vmatprep.subr.mxu0 0.0
    %653 = vmatpush1.msra.mxu0 0.0
    %654 = vmatprep.subr.mxu0 0.0
    %655 = vmatpush1.msra.mxu0 0.0
    %656 = vmatprep.subr.mxu0 0.0
    %657 = vmatpush1.msra.mxu0 0.0
    %658 = vmatprep.subr.mxu0 0.0
    %659 = vmatpush1.msra.mxu0 0.0
    %660 = vmatprep.subr.mxu0 0.0
    %661 = vmatpush1.msra.mxu0 0.0
    %662 = vmatprep.subr.mxu0 0.0
    %663 = vmatpush1.msra.mxu0 0.0
    %664 = vmatprep.subr.mxu0 0.0
    %665 = vmatpush1.msra.mxu0 0.0
    %666 = vmatprep.subr.mxu0 0.0
    %667 = vmatpush1.msra.mxu0 0.0
    %668 = vmatprep.mubr.f32.mxu0 0.0
    %669 = vmatmul.mubr.f32.gmra.mrb[0].mxu0 %v514
    %v670 = vpop.f32.mrb[0].mxu0
    %v671 = vadd.f32 0.0, %v670
    %v672 = vpop.f32.mrb[0].mxu0
    %673 = vmatprep.mubr.f32.mxu0 0.0
    %674 = vmatmul.mubr.f32.gmra.mrb[0].mxu0 %v517
    %v675 = vpop.f32.mrb[0].mxu0
    %v676 = vadd.f32 0.0, %v675
    %v677 = vpop.f32.mrb[0].mxu0
    %678 = vmatprep.mubr.f32.mxu0 0.0
    %679 = vmatmul.mubr.f32.gmra.mrb[0].mxu0 %v520
    %v680 = vpop.f32.mrb[0].mxu0
    %v681 = vadd.f32 0.0, %v680
    %v682 = vpop.f32.mrb[0].mxu0
    %683 = vmatprep.mubr.f32.mxu0 0.0
    %684 = vmatmul.mubr.f32.gmra.mrb[0].mxu0 %v523
    %v685 = vpop.f32.mrb[0].mxu0
    %v686 = vadd.f32 0.0, %v685
    %v687 = vpop.f32.mrb[0].mxu0
    %688 = vmatprep.mubr.f32.mxu0 0.0
    %689 = vmatmul.mubr.f32.gmra.mrb[0].mxu0 %v526
    %v690 = vpop.f32.mrb[0].mxu0
    %v691 = vadd.f32 0.0, %v690
    %v692 = vpop.f32.mrb[0].mxu0
    %693 = vmatprep.mubr.f32.mxu0 0.0
    %694 = vmatmul.mubr.f32.gmra.mrb[0].mxu0 %v529
    %v695 = vpop.f32.mrb[0].mxu0
    %v696 = vadd.f32 0.0, %v695
    %v697 = vpop.f32.mrb[0].mxu0
    %698 = vmatprep.mubr.f32.mxu0 0.0
    %699 = vmatmul.mubr.f32.gmra.mrb[0].mxu0 %v532
    %v700 = vpop.f32.mrb[0].mxu0
    %v701 = vadd.f32 0.0, %v700
    %v702 = vpop.f32.mrb[0].mxu0
    %703 = vmatprep.mubr.f32.mxu0 0.0
    %704 = vmatmul.mubr.f32.gmra.mrb[0].mxu0 %v535
    %v705 = vpop.f32.mrb[0].mxu0
    %v706 = vadd.f32 0.0, %v705
    %v707 = vpop.f32.mrb[0].mxu0
    %708 = vmatprep.mubr.f32.mxu0 0.0
    %709 = vmatmul.mubr.f32.gmra.mrb[0].mxu0 %v538
    %v710 = vpop.f32.mrb[0].mxu0
    %v711 = vadd.f32 0.0, %v710
    %v712 = vpop.f32.mrb[0].mxu0
    %713 = vmatprep.mubr.f32.mxu0 0.0
    %714 = vmatmul.mubr.f32.gmra.mrb[0].mxu0 %v541
    %v715 = vpop.f32.mrb[0].mxu0
    %v716 = vadd.f32 0.0, %v715
    %v717 = vpop.f32.mrb[0].mxu0
    %718 = vmatprep.mubr.f32.mxu0 0.0
    %719 = vmatmul.mubr.f32.gmra.mrb[0].mxu0 %v544
    %v720 = vpop.f32.mrb[0].mxu0
    %v721 = vadd.f32 0.0, %v720
    %v722 = vpop.f32.mrb[0].mxu0
    %723 = vmatprep.mubr.f32.mxu0 0.0
    %724 = vmatmul.mubr.f32.gmra.mrb[0].mxu0 %v547
    %v725 = vpop.f32.mrb[0].mxu0
    %v726 = vadd.f32 0.0, %v725
    %v727 = vpop.f32.mrb[0].mxu0
    %728 = vmatprep.mubr.f32.mxu0 0.0
    %729 = vmatmul.mubr.f32.gmra.mrb[0].mxu0 %v550
    %v730 = vpop.f32.mrb[0].mxu0
    %v731 = vadd.f32 0.0, %v730
    %v732 = vpop.f32.mrb[0].mxu0
    %733 = vmatprep.mubr.f32.mxu0 0.0
    %734 = vmatmul.mubr.f32.gmra.mrb[0].mxu0 %v553
    %v735 = vpop.f32.mrb[0].mxu0
    %v736 = vadd.f32 0.0, %v735
    %v737 = vpop.f32.mrb[0].mxu0
    %738 = vmatprep.mubr.f32.mxu0 0.0
    %739 = vmatmul.mubr.f32.gmra.mrb[0].mxu0 %v556
    %v740 = vpop.f32.mrb[0].mxu0
    %v741 = vadd.f32 0.0, %v740
    %v742 = vpop.f32.mrb[0].mxu0
    %743 = vmatprep.mubr.f32.mxu0 0.0
    %744 = vmatmul.mubr.f32.gmra.mrb[0].mxu0 %v559
    %v745 = vpop.f32.mrb[0].mxu0
    %v746 = vadd.f32 0.0, %v745
    %v747 = vpop.f32.mrb[0].mxu0
    %748 = vmatprep.mubr.f32.mxu0 0.0
    %749 = vmatmul.mubr.f32.gmra.mrb[0].mxu0 %v562
    %v750 = vpop.f32.mrb[0].mxu0
    %v751 = vadd.f32 0.0, %v750
    %v752 = vpop.f32.mrb[0].mxu0
    %753 = vmatprep.mubr.f32.mxu0 0.0
    %754 = vmatmul.mubr.f32.gmra.mrb[0].mxu0 %v565
    %v755 = vpop.f32.mrb[0].mxu0
    %v756 = vadd.f32 0.0, %v755
    %v757 = vpop.f32.mrb[0].mxu0
    %758 = vmatprep.mubr.f32.mxu0 0.0
    %759 = vmatmul.mubr.f32.gmra.mrb[0].mxu0 %v568
    %v760 = vpop.f32.mrb[0].mxu0
    %v761 = vadd.f32 0.0, %v760
    %v762 = vpop.f32.mrb[0].mxu0
    %763 = vmatprep.mubr.f32.mxu0 0.0
    %764 = vmatmul.mubr.f32.gmra.mrb[0].mxu0 %v571
    %v765 = vpop.f32.mrb[0].mxu0
    %v766 = vadd.f32 0.0, %v765
    %v767 = vpop.f32.mrb[0].mxu0
    %768 = vmatprep.mubr.f32.mxu0 0.0
    %769 = vmatmul.mubr.f32.gmra.mrb[0].mxu0 %v574
    %v770 = vpop.f32.mrb[0].mxu0
    %v771 = vadd.f32 0.0, %v770
    %v772 = vpop.f32.mrb[0].mxu0
    %773 = vmatprep.mubr.f32.mxu0 0.0
    %774 = vmatmul.mubr.f32.gmra.mrb[0].mxu0 %v577
    %v775 = vpop.f32.mrb[0].mxu0
    %v776 = vadd.f32 0.0, %v775
    %v777 = vpop.f32.mrb[0].mxu0
    %778 = vmatprep.mubr.f32.mxu0 0.0
    %779 = vmatmul.mubr.f32.gmra.mrb[0].mxu0 %v580
    %v780 = vpop.f32.mrb[0].mxu0
    %v781 = vadd.f32 0.0, %v780
    %v782 = vpop.f32.mrb[0].mxu0
    %783 = vmatprep.mubr.f32.mxu0 0.0
    %784 = vmatmul.mubr.f32.gmra.mrb[0].mxu0 %v583
    %v785 = vpop.f32.mrb[0].mxu0
    %v786 = vadd.f32 0.0, %v785
    %v787 = vpop.f32.mrb[0].mxu0
    %788 = vmatprep.mubr.f32.mxu0 0.0
    %789 = vmatmul.mubr.f32.gmra.mrb[0].mxu0 %v586
    %v790 = vpop.f32.mrb[0].mxu0
    %v791 = vadd.f32 0.0, %v790
    %v792 = vpop.f32.mrb[0].mxu0
    %793 = vmatprep.mubr.f32.mxu0 0.0
    %794 = vmatmul.mubr.f32.gmra.mrb[0].mxu0 %v589
    %v795 = vpop.f32.mrb[0].mxu0
    %v796 = vadd.f32 0.0, %v795
    %v797 = vpop.f32.mrb[0].mxu0
    %798 = vmatprep.mubr.f32.mxu0 0.0
    %799 = vmatmul.mubr.f32.gmra.mrb[0].mxu0 %v592
    %v800 = vpop.f32.mrb[0].mxu0
    %v801 = vadd.f32 0.0, %v800
    %v802 = vpop.f32.mrb[0].mxu0
    %803 = vmatprep.mubr.f32.mxu0 0.0
    %804 = vmatmul.mubr.f32.gmra.mrb[0].mxu0 %v595
    %v805 = vpop.f32.mrb[0].mxu0
    %v806 = vadd.f32 0.0, %v805
    %v807 = vpop.f32.mrb[0].mxu0
    %808 = vmatprep.mubr.f32.mxu0 0.0
    %809 = vmatmul.mubr.f32.gmra.mrb[0].mxu0 %v598
    %v810 = vpop.f32.mrb[0].mxu0
    %v811 = vadd.f32 0.0, %v810
    %v812 = vpop.f32.mrb[0].mxu0
    %813 = vdwg.mxu0
    %v814 = vld [vmem:[%s1] sm:$0xff]
    %v815 = vld [vmem:[%s1 + $0x8] sm:$0xff]
    %v816 = vld [vmem:[%s1 + $0x10] sm:$0xff]
    %v817 = vld [vmem:[%s1 + $0x18] sm:$0xff]
    %v818 = vld [vmem:[%s2] sm:$0xff]
    %v819 = vld [vmem:[%s2 + $0x8] sm:$0xff]
    %v820 = vld [vmem:[%s2 + $0x10] sm:$0xff]
    %v821 = vld [vmem:[%s2 + $0x18] sm:$0xff]
    %823 = vset.pattern.permute.xlu0 0
    %824 = vperm.xlu0 %823, %v818
    %v825 = vpop.permute.xlu0 %824
    %828 = vset.pattern.permute.xlu0 0
    %829 = vperm.xlu0 %828, %v819
    %v830 = vpop.permute.xlu0 %829
    %833 = vset.pattern.permute.xlu0 0
    %834 = vperm.xlu0 %833, %v820
    %v835 = vpop.permute.xlu0 %834
    %838 = vset.pattern.permute.xlu0 0
    %839 = vperm.xlu0 %838, %v821
    %v840 = vpop.permute.xlu0 %839
    %v843 = vsel %vm512, %v814, 0
    %v846 = vsel %vm512, %v815, 0
    %v849 = vsel %vm512, %v816, 0
    %v852 = vsel %vm512, %v817, 0
    %854 = vmatprep.subr.mxu0 0.0
    %855 = vmatpush1.msra.mxu0 %v480
    %856 = vmatprep.subr.mxu0 0.0
    %857 = vmatpush1.msra.mxu0 %v481
    %858 = vmatprep.subr.mxu0 0.0
    %859 = vmatpush1.msra.mxu0 %v602
    %860 = vmatprep.subr.mxu0 0.0
    %861 = vmatpush1.msra.mxu0 0.0
    %862 = vmatprep.subr.mxu0 0.0
    %863 = vmatpush1.msra.mxu0 0.0
    %864 = vmatprep.subr.mxu0 0.0
    %865 = vmatpush1.msra.mxu0 0.0
    %866 = vmatprep.subr.mxu0 0.0
    %867 = vmatpush1.msra.mxu0 0.0
    %868 = vmatprep.subr.mxu0 0.0
    %869 = vmatpush1.msra.mxu0 0.0
    %870 = vmatprep.subr.mxu0 0.0
    %871 = vmatpush1.msra.mxu0 0.0
    %872 = vmatprep.subr.mxu0 0.0
    %873 = vmatpush1.msra.mxu0 0.0
    %874 = vmatprep.subr.mxu0 0.0
    %875 = vmatpush1.msra.mxu0 0.0
    %876 = vmatprep.subr.mxu0 0.0
    %877 = vmatpush1.msra.mxu0 0.0
    %878 = vmatprep.subr.mxu0 0.0
    %879 = vmatpush1.msra.mxu0 0.0
    %880 = vmatprep.subr.mxu0 0.0
    %881 = vmatpush1.msra.mxu0 0.0
    %882 = vmatprep.subr.mxu0 0.0
    %883 = vmatpush1.msra.mxu0 0.0
    %884 = vmatprep.subr.mxu0 0.0
    %885 = vmatpush1.msra.mxu0 0.0
    %886 = vmatprep.subr.mxu0 0.0
    %887 = vmatpush1.msra.mxu0 0.0
    %888 = vmatprep.subr.mxu0 0.0
    %889 = vmatpush1.msra.mxu0 0.0
    %890 = vmatprep.subr.mxu0 0.0
    %891 = vmatpush1.msra.mxu0 0.0
    %892 = vmatprep.subr.mxu0 0.0
    %893 = vmatpush1.msra.mxu0 0.0
    %894 = vmatprep.subr.mxu0 0.0
    %895 = vmatpush1.msra.mxu0 0.0
    %896 = vmatprep.subr.mxu0 0.0
    %897 = vmatpush1.msra.mxu0 0.0
    %898 = vmatprep.subr.mxu0 0.0
    %899 = vmatpush1.msra.mxu0 0.0
    %900 = vmatprep.subr.mxu0 0.0
    %901 = vmatpush1.msra.mxu0 0.0
    %902 = vmatprep.subr.mxu0 0.0
    %903 = vmatpush1.msra.mxu0 0.0
    %904 = vmatprep.subr.mxu0 0.0
    %905 = vmatpush1.msra.mxu0 0.0
    %906 = vmatprep.subr.mxu0 0.0
    %907 = vmatpush1.msra.mxu0 0.0
    %908 = vmatprep.subr.mxu0 0.0
    %909 = vmatpush1.msra.mxu0 0.0
    %910 = vmatprep.subr.mxu0 0.0
    %911 = vmatpush1.msra.mxu0 0.0
    %912 = vmatprep.subr.mxu0 0.0
    %913 = vmatpush1.msra.mxu0 0.0
    %914 = vmatprep.subr.mxu0 0.0
    %915 = vmatpush1.msra.mxu0 0.0
    %916 = vmatprep.subr.mxu0 0.0
    %917 = vmatpush1.msra.mxu0 0.0
    %918 = vmatprep.mubr.f32.mxu0 0.0
    %919 = vmatmul.mubr.f32.gmra.mrb[0].mxu0 %v843
    %v920 = vpop.f32.mrb[0].mxu0
    %v921 = vadd.f32 %v825, %v920
    %v922 = vpop.f32.mrb[0].mxu0
    %923 = vmatprep.mubr.f32.mxu0 0.0
    %924 = vmatmul.mubr.f32.gmra.mrb[0].mxu0 %v846
    %v925 = vpop.f32.mrb[0].mxu0
    %v926 = vadd.f32 %v830, %v925
    %v927 = vpop.f32.mrb[0].mxu0
    %928 = vmatprep.mubr.f32.mxu0 0.0
    %929 = vmatmul.mubr.f32.gmra.mrb[0].mxu0 %v849
    %v930 = vpop.f32.mrb[0].mxu0
    %v931 = vadd.f32 %v835, %v930
    %v932 = vpop.f32.mrb[0].mxu0
    %933 = vmatprep.mubr.f32.mxu0 0.0
    %934 = vmatmul.mubr.f32.gmra.mrb[0].mxu0 %v852
    %v935 = vpop.f32.mrb[0].mxu0
    %v936 = vadd.f32 %v840, %v935
    %v937 = vpop.f32.mrb[0].mxu0
    %938 = vdwg.mxu0
    %vm939 = vcmp.gt.f32.partialorder %v921, 0.0
    %vm940 = vcmp.gt.f32.partialorder %v926, 0.0
    %vm941 = vcmp.gt.f32.partialorder %v931, 0.0
    %vm942 = vcmp.gt.f32.partialorder %v936, 0.0
    %v943 = vmul.f32 %v921, 0.01
    %v944 = vmul.f32 %v926, 0.01
    %v945 = vmul.f32 %v931, 0.01
    %v946 = vmul.f32 %v936, 0.01
    %v947 = vsel %vm939, %v921, %v943
    %v948 = vsel %vm940, %v926, %v944
    %v949 = vsel %vm941, %v931, %v945
    %v950 = vsel %vm942, %v936, %v946
    %v951 = vld [vmem:[%s3] sm:$0xff]
    %v952 = vld [vmem:[%s3 + $0x8] sm:$0xff]
    %v953 = vld [vmem:[%s3 + $0x10] sm:$0xff]
    %v954 = vld [vmem:[%s3 + $0x18] sm:$0xff]
    %vm955 = vcmask 261120
    %v957 = vsel %vm955, %v951, 0
    %v960 = vsel %vm955, %v952, 0
    %v963 = vsel %vm955, %v953, 0
    %v966 = vsel %vm955, %v954, 0
    %968 = vmatprep.subr.mxu0 0.0
    %969 = vmatpush1.msra.mxu0 %v947
    %970 = vmatprep.subr.mxu0 0.0
    %971 = vmatpush1.msra.mxu0 %v948
    %972 = vmatprep.subr.mxu0 0.0
    %973 = vmatpush1.msra.mxu0 %v949
    %974 = vmatprep.subr.mxu0 0.0
    %975 = vmatpush1.msra.mxu0 %v950
    %976 = vmatprep.subr.mxu0 0.0
    %977 = vmatpush1.msra.mxu0 0.0
    %978 = vmatprep.subr.mxu0 0.0
    %979 = vmatpush1.msra.mxu0 0.0
    %980 = vmatprep.subr.mxu0 0.0
    %981 = vmatpush1.msra.mxu0 0.0
    %982 = vmatprep.subr.mxu0 0.0
    %983 = vmatpush1.msra.mxu0 0.0
    %984 = vmatprep.subr.mxu0 0.0
    %985 = vmatpush1.msra.mxu0 0.0
    %986 = vmatprep.subr.mxu0 0.0
    %987 = vmatpush1.msra.mxu0 0.0
    %988 = vmatprep.subr.mxu0 0.0
    %989 = vmatpush1.msra.mxu0 0.0
    %990 = vmatprep.subr.mxu0 0.0
    %991 = vmatpush1.msra.mxu0 0.0
    %992 = vmatprep.subr.mxu0 0.0
    %993 = vmatpush1.msra.mxu0 0.0
    %994 = vmatprep.subr.mxu0 0.0
    %995 = vmatpush1.msra.mxu0 0.0
    %996 = vmatprep.subr.mxu0 0.0
    %997 = vmatpush1.msra.mxu0 0.0
    %998 = vmatprep.subr.mxu0 0.0
    %999 = vmatpush1.msra.mxu0 0.0
    %1000 = vmatprep.subr.mxu0 0.0
    %1001 = vmatpush1.msra.mxu0 0.0
    %1002 = vmatprep.subr.mxu0 0.0
    %1003 = vmatpush1.msra.mxu0 0.0
    %1004 = vmatprep.subr.mxu0 0.0
    %1005 = vmatpush1.msra.mxu0 0.0
    %1006 = vmatprep.subr.mxu0 0.0
    %1007 = vmatpush1.msra.mxu0 0.0
    %1008 = vmatprep.subr.mxu0 0.0
    %1009 = vmatpush1.msra.mxu0 0.0
    %1010 = vmatprep.subr.mxu0 0.0
    %1011 = vmatpush1.msra.mxu0 0.0
    %1012 = vmatprep.subr.mxu0 0.0
    %1013 = vmatpush1.msra.mxu0 0.0
    %1014 = vmatprep.subr.mxu0 0.0
    %1015 = vmatpush1.msra.mxu0 0.0
    %1016 = vmatprep.subr.mxu0 0.0
    %1017 = vmatpush1.msra.mxu0 0.0
    %1018 = vmatprep.subr.mxu0 0.0
    %1019 = vmatpush1.msra.mxu0 0.0
    %1020 = vmatprep.subr.mxu0 0.0
    %1021 = vmatpush1.msra.mxu0 0.0
    %1022 = vmatprep.subr.mxu0 0.0
    %1023 = vmatpush1.msra.mxu0 0.0
    %1024 = vmatprep.subr.mxu0 0.0
    %1025 = vmatpush1.msra.mxu0 0.0
    %1026 = vmatprep.subr.mxu0 0.0
    %1027 = vmatpush1.msra.mxu0 0.0
    %1028 = vmatprep.subr.mxu0 0.0
    %1029 = vmatpush1.msra.mxu0 0.0
    %1030 = vmatprep.subr.mxu0 0.0
    %1031 = vmatpush1.msra.mxu0 0.0
    %1032 = vmatprep.mubr.f32.mxu0 0.0
    %1033 = vmatmul.mubr.f32.gmra.mrb[0].mxu0 %v957
    %v1034 = vpop.f32.mrb[0].mxu0
    %v1035 = vadd.f32 %v671, %v1034
    %v1036 = vpop.f32.mrb[0].mxu0
    %1037 = vmatprep.mubr.f32.mxu0 0.0
    %1038 = vmatmul.mubr.f32.gmra.mrb[0].mxu0 %v960
    %v1039 = vpop.f32.mrb[0].mxu0
    %v1040 = vadd.f32 %v676, %v1039
    %v1041 = vpop.f32.mrb[0].mxu0
    %1042 = vmatprep.mubr.f32.mxu0 0.0
    %1043 = vmatmul.mubr.f32.gmra.mrb[0].mxu0 %v963
    %v1044 = vpop.f32.mrb[0].mxu0
    %v1045 = vadd.f32 %v681, %v1044
    %v1046 = vpop.f32.mrb[0].mxu0
    %1047 = vmatprep.mubr.f32.mxu0 0.0
    %1048 = vmatmul.mubr.f32.gmra.mrb[0].mxu0 %v966
    %v1049 = vpop.f32.mrb[0].mxu0
    %v1050 = vadd.f32 %v686, %v1049
    %v1051 = vpop.f32.mrb[0].mxu0
    %1052 = vdwg.mxu0
    %v1053 = vld [vmem:[%s6] sm:$0xff]
    %v1054 = vld [vmem:[%s6 + $0x8] sm:$0xff]
    %v1055 = vld [vmem:[%s6 + $0x10] sm:$0xff]
    %v1056 = vld [vmem:[%s6 + $0x18] sm:$0xff]
    %1058 = vset.pattern.permute.xlu0 0
    %1059 = vperm.xlu0 %1058, %v1053
    %v1060 = vpop.permute.xlu0 %1059
    %1063 = vset.pattern.permute.xlu0 0
    %1064 = vperm.xlu0 %1063, %v1054
    %v1065 = vpop.permute.xlu0 %1064
    %1068 = vset.pattern.permute.xlu0 0
    %1069 = vperm.xlu0 %1068, %v1055
    %v1070 = vpop.permute.xlu0 %1069
    %1073 = vset.pattern.permute.xlu0 0
    %1074 = vperm.xlu0 %1073, %v1056
    %v1075 = vpop.permute.xlu0 %1074
    %v1077 = vadd.f32 %v1035, %v1060
    %v1078 = vadd.f32 %v1040, %v1065
    %v1079 = vadd.f32 %v1045, %v1070
    %v1080 = vadd.f32 %v1050, %v1075
    %vm1081 = vcmp.gt.f32.partialorder %v1077, 0.0
    %vm1082 = vcmp.gt.f32.partialorder %v1078, 0.0
    %vm1083 = vcmp.gt.f32.partialorder %v1079, 0.0
    %vm1084 = vcmp.gt.f32.partialorder %v1080, 0.0
    %v1085 = vmul.f32 %v1077, 0.01
    %v1086 = vmul.f32 %v1078, 0.01
    %v1087 = vmul.f32 %v1079, 0.01
    %v1088 = vmul.f32 %v1080, 0.01
    %v1089 = vsel %vm1081, %v1077, %v1085
    %v1090 = vsel %vm1082, %v1078, %v1086
    %v1091 = vsel %vm1083, %v1079, %v1087
    %v1092 = vsel %vm1084, %v1080, %v1088
    %s1093 = scalar_lea.vmem %s3, 32
    %v1094 = vld [vmem:[%s1093] sm:$0xff]
    %v1095 = vld [vmem:[%s1093 + $0x8] sm:$0xff]
    %v1096 = vld [vmem:[%s1093 + $0x10] sm:$0xff]
    %v1097 = vld [vmem:[%s1093 + $0x18] sm:$0xff]
    %v1099 = vsel %vm955, %v1094, 0
    %v1102 = vsel %vm955, %v1095, 0
    %v1105 = vsel %vm955, %v1096, 0
    %v1108 = vsel %vm955, %v1097, 0
    %1110 = vmatprep.subr.mxu0 0.0
    %1111 = vmatpush1.msra.mxu0 %v1089
    %1112 = vmatprep.subr.mxu0 0.0
    %1113 = vmatpush1.msra.mxu0 %v1090
    %1114 = vmatprep.subr.mxu0 0.0
    %1115 = vmatpush1.msra.mxu0 %v1091
    %1116 = vmatprep.subr.mxu0 0.0
    %1117 = vmatpush1.msra.mxu0 %v1092
    %1118 = vmatprep.subr.mxu0 0.0
    %1119 = vmatpush1.msra.mxu0 0.0
    %1120 = vmatprep.subr.mxu0 0.0
    %1121 = vmatpush1.msra.mxu0 0.0
    %1122 = vmatprep.subr.mxu0 0.0
    %1123 = vmatpush1.msra.mxu0 0.0
    %1124 = vmatprep.subr.mxu0 0.0
    %1125 = vmatpush1.msra.mxu0 0.0
    %1126 = vmatprep.subr.mxu0 0.0
    %1127 = vmatpush1.msra.mxu0 0.0
    %1128 = vmatprep.subr.mxu0 0.0
    %1129 = vmatpush1.msra.mxu0 0.0
    %1130 = vmatprep.subr.mxu0 0.0
    %1131 = vmatpush1.msra.mxu0 0.0
    %1132 = vmatprep.subr.mxu0 0.0
    %1133 = vmatpush1.msra.mxu0 0.0
    %1134 = vmatprep.subr.mxu0 0.0
    %1135 = vmatpush1.msra.mxu0 0.0
    %1136 = vmatprep.subr.mxu0 0.0
    %1137 = vmatpush1.msra.mxu0 0.0
    %1138 = vmatprep.subr.mxu0 0.0
    %1139 = vmatpush1.msra.mxu0 0.0
    %1140 = vmatprep.subr.mxu0 0.0
    %1141 = vmatpush1.msra.mxu0 0.0
    %1142 = vmatprep.subr.mxu0 0.0
    %1143 = vmatpush1.msra.mxu0 0.0
    %1144 = vmatprep.subr.mxu0 0.0
    %1145 = vmatpush1.msra.mxu0 0.0
    %1146 = vmatprep.subr.mxu0 0.0
    %1147 = vmatpush1.msra.mxu0 0.0
    %1148 = vmatprep.subr.mxu0 0.0
    %1149 = vmatpush1.msra.mxu0 0.0
    %1150 = vmatprep.subr.mxu0 0.0
    %1151 = vmatpush1.msra.mxu0 0.0
    %1152 = vmatprep.subr.mxu0 0.0
    %1153 = vmatpush1.msra.mxu0 0.0
    %1154 = vmatprep.subr.mxu0 0.0
    %1155 = vmatpush1.msra.mxu0 0.0
    %1156 = vmatprep.subr.mxu0 0.0
    %1157 = vmatpush1.msra.mxu0 0.0
    %1158 = vmatprep.subr.mxu0 0.0
    %1159 = vmatpush1.msra.mxu0 0.0
    %1160 = vmatprep.subr.mxu0 0.0
    %1161 = vmatpush1.msra.mxu0 0.0
    %1162 = vmatprep.subr.mxu0 0.0
    %1163 = vmatpush1.msra.mxu0 0.0
    %1164 = vmatprep.subr.mxu0 0.0
    %1165 = vmatpush1.msra.mxu0 0.0
    %1166 = vmatprep.subr.mxu0 0.0
    %1167 = vmatpush1.msra.mxu0 0.0
    %1168 = vmatprep.subr.mxu0 0.0
    %1169 = vmatpush1.msra.mxu0 0.0
    %1170 = vmatprep.subr.mxu0 0.0
    %1171 = vmatpush1.msra.mxu0 0.0
    %1172 = vmatprep.subr.mxu0 0.0
    %1173 = vmatpush1.msra.mxu0 0.0
    %1174 = vmatprep.mubr.f32.mxu0 0.0
    %1175 = vmatmul.mubr.f32.gmra.mrb[0].mxu0 %v1099
    %v1176 = vpop.f32.mrb[0].mxu0
    %v1177 = vadd.f32 %v691, %v1176
    %v1178 = vpop.f32.mrb[0].mxu0
    %1179 = vmatprep.mubr.f32.mxu0 0.0
    %1180 = vmatmul.mubr.f32.gmra.mrb[0].mxu0 %v1102
    %v1181 = vpop.f32.mrb[0].mxu0
    %v1182 = vadd.f32 %v696, %v1181
    %v1183 = vpop.f32.mrb[0].mxu0
    %1184 = vmatprep.mubr.f32.mxu0 0.0
    %1185 = vmatmul.mubr.f32.gmra.mrb[0].mxu0 %v1105
    %v1186 = vpop.f32.mrb[0].mxu0
    %v1187 = vadd.f32 %v701, %v1186
    %v1188 = vpop.f32.mrb[0].mxu0
    %1189 = vmatprep.mubr.f32.mxu0 0.0
    %1190 = vmatmul.mubr.f32.gmra.mrb[0].mxu0 %v1108
    %v1191 = vpop.f32.mrb[0].mxu0
    %v1192 = vadd.f32 %v706, %v1191
    %v1193 = vpop.f32.mrb[0].mxu0
    %1194 = vdwg.mxu0
    %s1195 = scalar_lea.vmem %s6, 32
    %v1196 = vld [vmem:[%s1195] sm:$0xff]
    %v1197 = vld [vmem:[%s1195 + $0x8] sm:$0xff]
    %v1198 = vld [vmem:[%s1195 + $0x10] sm:$0xff]
    %v1199 = vld [vmem:[%s1195 + $0x18] sm:$0xff]
    %1201 = vset.pattern.permute.xlu0 0
    %1202 = vperm.xlu0 %1201, %v1196
    %v1203 = vpop.permute.xlu0 %1202
    %1206 = vset.pattern.permute.xlu0 0
    %1207 = vperm.xlu0 %1206, %v1197
    %v1208 = vpop.permute.xlu0 %1207
    %1211 = vset.pattern.permute.xlu0 0
    %1212 = vperm.xlu0 %1211, %v1198
    %v1213 = vpop.permute.xlu0 %1212
    %1216 = vset.pattern.permute.xlu0 0
    %1217 = vperm.xlu0 %1216, %v1199
    %v1218 = vpop.permute.xlu0 %1217
    %v1220 = vadd.f32 %v1177, %v1203
    %v1221 = vadd.f32 %v1182, %v1208
    %v1222 = vadd.f32 %v1187, %v1213
    %v1223 = vadd.f32 %v1192, %v1218
    %s1224 = scalar_lea.vmem %s4, 32
    %v1225 = vld [vmem:[%s1224] sm:$0xff]
    %v1226 = vld [vmem:[%s1224 + $0x8] sm:$0xff]
    %v1227 = vld [vmem:[%s1224 + $0x10] sm:$0xff]
    %v1228 = vld [vmem:[%s1224 + $0x18] sm:$0xff]
    %v1230 = vsel %vm955, %v1225, 0
    %v1233 = vsel %vm955, %v1226, 0
    %v1236 = vsel %vm955, %v1227, 0
    %v1239 = vsel %vm955, %v1228, 0
    %1241 = vmatprep.subr.mxu0 0.0
    %1242 = vmatpush1.msra.mxu0 %v947
    %1243 = vmatprep.subr.mxu0 0.0
    %1244 = vmatpush1.msra.mxu0 %v948
    %1245 = vmatprep.subr.mxu0 0.0
    %1246 = vmatpush1.msra.mxu0 %v949
    %1247 = vmatprep.subr.mxu0 0.0
    %1248 = vmatpush1.msra.mxu0 %v950
    %1249 = vmatprep.subr.mxu0 0.0
    %1250 = vmatpush1.msra.mxu0 0.0
    %1251 = vmatprep.subr.mxu0 0.0
    %1252 = vmatpush1.msra.mxu0 0.0
    %1253 = vmatprep.subr.mxu0 0.0
    %1254 = vmatpush1.msra.mxu0 0.0
    %1255 = vmatprep.subr.mxu0 0.0
    %1256 = vmatpush1.msra.mxu0 0.0
    %1257 = vmatprep.subr.mxu0 0.0
    %1258 = vmatpush1.msra.mxu0 0.0
    %1259 = vmatprep.subr.mxu0 0.0
    %1260 = vmatpush1.msra.mxu0 0.0
    %1261 = vmatprep.subr.mxu0 0.0
    %1262 = vmatpush1.msra.mxu0 0.0
    %1263 = vmatprep.subr.mxu0 0.0
    %1264 = vmatpush1.msra.mxu0 0.0
    %1265 = vmatprep.subr.mxu0 0.0
    %1266 = vmatpush1.msra.mxu0 0.0
    %1267 = vmatprep.subr.mxu0 0.0
    %1268 = vmatpush1.msra.mxu0 0.0
    %1269 = vmatprep.subr.mxu0 0.0
    %1270 = vmatpush1.msra.mxu0 0.0
    %1271 = vmatprep.subr.mxu0 0.0
    %1272 = vmatpush1.msra.mxu0 0.0
    %1273 = vmatprep.subr.mxu0 0.0
    %1274 = vmatpush1.msra.mxu0 0.0
    %1275 = vmatprep.subr.mxu0 0.0
    %1276 = vmatpush1.msra.mxu0 0.0
    %1277 = vmatprep.subr.mxu0 0.0
    %1278 = vmatpush1.msra.mxu0 0.0
    %1279 = vmatprep.subr.mxu0 0.0
    %1280 = vmatpush1.msra.mxu0 0.0
    %1281 = vmatprep.subr.mxu0 0.0
    %1282 = vmatpush1.msra.mxu0 0.0
    %1283 = vmatprep.subr.mxu0 0.0
    %1284 = vmatpush1.msra.mxu0 0.0
    %1285 = vmatprep.subr.mxu0 0.0
    %1286 = vmatpush1.msra.mxu0 0.0
    %1287 = vmatprep.subr.mxu0 0.0
    %1288 = vmatpush1.msra.mxu0 0.0
    %1289 = vmatprep.subr.mxu0 0.0
    %1290 = vmatpush1.msra.mxu0 0.0
    %1291 = vmatprep.subr.mxu0 0.0
    %1292 = vmatpush1.msra.mxu0 0.0
    %1293 = vmatprep.subr.mxu0 0.0
    %1294 = vmatpush1.msra.mxu0 0.0
    %1295 = vmatprep.subr.mxu0 0.0
    %1296 = vmatpush1.msra.mxu0 0.0
    %1297 = vmatprep.subr.mxu0 0.0
    %1298 = vmatpush1.msra.mxu0 0.0
    %1299 = vmatprep.subr.mxu0 0.0
    %1300 = vmatpush1.msra.mxu0 0.0
    %1301 = vmatprep.subr.mxu0 0.0
    %1302 = vmatpush1.msra.mxu0 0.0
    %1303 = vmatprep.subr.mxu0 0.0
    %1304 = vmatpush1.msra.mxu0 0.0
    %1305 = vmatprep.mubr.f32.mxu0 0.0
    %1306 = vmatmul.mubr.f32.gmra.mrb[0].mxu0 %v1230
    %v1307 = vpop.f32.mrb[0].mxu0
    %v1308 = vadd.f32 0.0, %v1307
    %v1309 = vpop.f32.mrb[0].mxu0
    %1310 = vmatprep.mubr.f32.mxu0 0.0
    %1311 = vmatmul.mubr.f32.gmra.mrb[0].mxu0 %v1233
    %v1312 = vpop.f32.mrb[0].mxu0
    %v1313 = vadd.f32 0.0, %v1312
    %v1314 = vpop.f32.mrb[0].mxu0
    %1315 = vmatprep.mubr.f32.mxu0 0.0
    %1316 = vmatmul.mubr.f32.gmra.mrb[0].mxu0 %v1236
    %v1317 = vpop.f32.mrb[0].mxu0
    %v1318 = vadd.f32 0.0, %v1317
    %v1319 = vpop.f32.mrb[0].mxu0
    %1320 = vmatprep.mubr.f32.mxu0 0.0
    %1321 = vmatmul.mubr.f32.gmra.mrb[0].mxu0 %v1239
    %v1322 = vpop.f32.mrb[0].mxu0
    %v1323 = vadd.f32 0.0, %v1322
    %v1324 = vpop.f32.mrb[0].mxu0
    %1325 = vdwg.mxu0
    %v1326 = vadd.f32 %v1220, %v1308
    %v1327 = vadd.f32 %v1221, %v1313
    %v1328 = vadd.f32 %v1222, %v1318
    %v1329 = vadd.f32 %v1223, %v1323
    %vm1330 = vcmp.gt.f32.partialorder %v1326, 0.0
    %vm1331 = vcmp.gt.f32.partialorder %v1327, 0.0
    %vm1332 = vcmp.gt.f32.partialorder %v1328, 0.0
    %vm1333 = vcmp.gt.f32.partialorder %v1329, 0.0
    %v1334 = vmul.f32 %v1326, 0.01
    %v1335 = vmul.f32 %v1327, 0.01
    %v1336 = vmul.f32 %v1328, 0.01
    %v1337 = vmul.f32 %v1329, 0.01
    %v1338 = vsel %vm1330, %v1326, %v1334
    %v1339 = vsel %vm1331, %v1327, %v1335
    %v1340 = vsel %vm1332, %v1328, %v1336
    %v1341 = vsel %vm1333, %v1329, %v1337
    %s1342 = scalar_lea.vmem %s3, 64
    %v1343 = vld [vmem:[%s1342] sm:$0xff]
    %v1344 = vld [vmem:[%s1342 + $0x8] sm:$0xff]
    %v1345 = vld [vmem:[%s1342 + $0x10] sm:$0xff]
    %v1346 = vld [vmem:[%s1342 + $0x18] sm:$0xff]
    %v1348 = vsel %vm955, %v1343, 0
    %v1351 = vsel %vm955, %v1344, 0
    %v1354 = vsel %vm955, %v1345, 0
    %v1357 = vsel %vm955, %v1346, 0
    %1359 = vmatprep.subr.mxu0 0.0
    %1360 = vmatpush1.msra.mxu0 %v1338
    %1361 = vmatprep.subr.mxu0 0.0
    %1362 = vmatpush1.msra.mxu0 %v1339
    %1363 = vmatprep.subr.mxu0 0.0
    %1364 = vmatpush1.msra.mxu0 %v1340
    %1365 = vmatprep.subr.mxu0 0.0
    %1366 = vmatpush1.msra.mxu0 %v1341
    %1367 = vmatprep.subr.mxu0 0.0
    %1368 = vmatpush1.msra.mxu0 0.0
    %1369 = vmatprep.subr.mxu0 0.0
    %1370 = vmatpush1.msra.mxu0 0.0
    %1371 = vmatprep.subr.mxu0 0.0
    %1372 = vmatpush1.msra.mxu0 0.0
    %1373 = vmatprep.subr.mxu0 0.0
    %1374 = vmatpush1.msra.mxu0 0.0
    %1375 = vmatprep.subr.mxu0 0.0
    %1376 = vmatpush1.msra.mxu0 0.0
    %1377 = vmatprep.subr.mxu0 0.0
    %1378 = vmatpush1.msra.mxu0 0.0
    %1379 = vmatprep.subr.mxu0 0.0
    %1380 = vmatpush1.msra.mxu0 0.0
    %1381 = vmatprep.subr.mxu0 0.0
    %1382 = vmatpush1.msra.mxu0 0.0
    %1383 = vmatprep.subr.mxu0 0.0
    %1384 = vmatpush1.msra.mxu0 0.0
    %1385 = vmatprep.subr.mxu0 0.0
    %1386 = vmatpush1.msra.mxu0 0.0
    %1387 = vmatprep.subr.mxu0 0.0
    %1388 = vmatpush1.msra.mxu0 0.0
    %1389 = vmatprep.subr.mxu0 0.0
    %1390 = vmatpush1.msra.mxu0 0.0
    %1391 = vmatprep.subr.mxu0 0.0
    %1392 = vmatpush1.msra.mxu0 0.0
    %1393 = vmatprep.subr.mxu0 0.0
    %1394 = vmatpush1.msra.mxu0 0.0
    %1395 = vmatprep.subr.mxu0 0.0
    %1396 = vmatpush1.msra.mxu0 0.0
    %1397 = vmatprep.subr.mxu0 0.0
    %1398 = vmatpush1.msra.mxu0 0.0
    %1399 = vmatprep.subr.mxu0 0.0
    %1400 = vmatpush1.msra.mxu0 0.0
    %1401 = vmatprep.subr.mxu0 0.0
    %1402 = vmatpush1.msra.mxu0 0.0
    %1403 = vmatprep.subr.mxu0 0.0
    %1404 = vmatpush1.msra.mxu0 0.0
    %1405 = vmatprep.subr.mxu0 0.0
    %1406 = vmatpush1.msra.mxu0 0.0
    %1407 = vmatprep.subr.mxu0 0.0
    %1408 = vmatpush1.msra.mxu0 0.0
    %1409 = vmatprep.subr.mxu0 0.0
    %1410 = vmatpush1.msra.mxu0 0.0
    %1411 = vmatprep.subr.mxu0 0.0
    %1412 = vmatpush1.msra.mxu0 0.0
    %1413 = vmatprep.subr.mxu0 0.0
    %1414 = vmatpush1.msra.mxu0 0.0
    %1415 = vmatprep.subr.mxu0 0.0
    %1416 = vmatpush1.msra.mxu0 0.0
    %1417 = vmatprep.subr.mxu0 0.0
    %1418 = vmatpush1.msra.mxu0 0.0
    %1419 = vmatprep.subr.mxu0 0.0
    %1420 = vmatpush1.msra.mxu0 0.0
    %1421 = vmatprep.subr.mxu0 0.0
    %1422 = vmatpush1.msra.mxu0 0.0
    %1423 = vmatprep.mubr.f32.mxu0 0.0
    %1424 = vmatmul.mubr.f32.gmra.mrb[0].mxu0 %v1348
    %v1425 = vpop.f32.mrb[0].mxu0
    %v1426 = vadd.f32 %v711, %v1425
    %v1427 = vpop.f32.mrb[0].mxu0
    %1428 = vmatprep.mubr.f32.mxu0 0.0
    %1429 = vmatmul.mubr.f32.gmra.mrb[0].mxu0 %v1351
    %v1430 = vpop.f32.mrb[0].mxu0
    %v1431 = vadd.f32 %v716, %v1430
    %v1432 = vpop.f32.mrb[0].mxu0
    %1433 = vmatprep.mubr.f32.mxu0 0.0
    %1434 = vmatmul.mubr.f32.gmra.mrb[0].mxu0 %v1354
    %v1435 = vpop.f32.mrb[0].mxu0
    %v1436 = vadd.f32 %v721, %v1435
    %v1437 = vpop.f32.mrb[0].mxu0
    %1438 = vmatprep.mubr.f32.mxu0 0.0
    %1439 = vmatmul.mubr.f32.gmra.mrb[0].mxu0 %v1357
    %v1440 = vpop.f32.mrb[0].mxu0
    %v1441 = vadd.f32 %v726, %v1440
    %v1442 = vpop.f32.mrb[0].mxu0
    %1443 = vdwg.mxu0
    %s1444 = scalar_lea.vmem %s6, 64
    %v1445 = vld [vmem:[%s1444] sm:$0xff]
    %v1446 = vld [vmem:[%s1444 + $0x8] sm:$0xff]
    %v1447 = vld [vmem:[%s1444 + $0x10] sm:$0xff]
    %v1448 = vld [vmem:[%s1444 + $0x18] sm:$0xff]
    %1450 = vset.pattern.permute.xlu0 0
    %1451 = vperm.xlu0 %1450, %v1445
    %v1452 = vpop.permute.xlu0 %1451
    %1455 = vset.pattern.permute.xlu0 0
    %1456 = vperm.xlu0 %1455, %v1446
    %v1457 = vpop.permute.xlu0 %1456
    %1460 = vset.pattern.permute.xlu0 0
    %1461 = vperm.xlu0 %1460, %v1447
    %v1462 = vpop.permute.xlu0 %1461
    %1465 = vset.pattern.permute.xlu0 0
    %1466 = vperm.xlu0 %1465, %v1448
    %v1467 = vpop.permute.xlu0 %1466
    %v1469 = vadd.f32 %v1426, %v1452
    %v1470 = vadd.f32 %v1431, %v1457
    %v1471 = vadd.f32 %v1436, %v1462
    %v1472 = vadd.f32 %v1441, %v1467
    %s1473 = scalar_lea.vmem %s4, 64
    %v1474 = vld [vmem:[%s1473] sm:$0xff]
    %v1475 = vld [vmem:[%s1473 + $0x8] sm:$0xff]
    %v1476 = vld [vmem:[%s1473 + $0x10] sm:$0xff]
    %v1477 = vld [vmem:[%s1473 + $0x18] sm:$0xff]
    %v1479 = vsel %vm955, %v1474, 0
    %v1482 = vsel %vm955, %v1475, 0
    %v1485 = vsel %vm955, %v1476, 0
    %v1488 = vsel %vm955, %v1477, 0
    %1490 = vmatprep.subr.mxu0 0.0
    %1491 = vmatpush1.msra.mxu0 %v1089
    %1492 = vmatprep.subr.mxu0 0.0
    %1493 = vmatpush1.msra.mxu0 %v1090
    %1494 = vmatprep.subr.mxu0 0.0
    %1495 = vmatpush1.msra.mxu0 %v1091
    %1496 = vmatprep.subr.mxu0 0.0
    %1497 = vmatpush1.msra.mxu0 %v1092
    %1498 = vmatprep.subr.mxu0 0.0
    %1499 = vmatpush1.msra.mxu0 0.0
    %1500 = vmatprep.subr.mxu0 0.0
    %1501 = vmatpush1.msra.mxu0 0.0
    %1502 = vmatprep.subr.mxu0 0.0
    %1503 = vmatpush1.msra.mxu0 0.0
    %1504 = vmatprep.subr.mxu0 0.0
    %1505 = vmatpush1.msra.mxu0 0.0
    %1506 = vmatprep.subr.mxu0 0.0
    %1507 = vmatpush1.msra.mxu0 0.0
    %1508 = vmatprep.subr.mxu0 0.0
    %1509 = vmatpush1.msra.mxu0 0.0
    %1510 = vmatprep.subr.mxu0 0.0
    %1511 = vmatpush1.msra.mxu0 0.0
    %1512 = vmatprep.subr.mxu0 0.0
    %1513 = vmatpush1.msra.mxu0 0.0
    %1514 = vmatprep.subr.mxu0 0.0
    %1515 = vmatpush1.msra.mxu0 0.0
    %1516 = vmatprep.subr.mxu0 0.0
    %1517 = vmatpush1.msra.mxu0 0.0
    %1518 = vmatprep.subr.mxu0 0.0
    %1519 = vmatpush1.msra.mxu0 0.0
    %1520 = vmatprep.subr.mxu0 0.0
    %1521 = vmatpush1.msra.mxu0 0.0
    %1522 = vmatprep.subr.mxu0 0.0
    %1523 = vmatpush1.msra.mxu0 0.0
    %1524 = vmatprep.subr.mxu0 0.0
    %1525 = vmatpush1.msra.mxu0 0.0
    %1526 = vmatprep.subr.mxu0 0.0
    %1527 = vmatpush1.msra.mxu0 0.0
    %1528 = vmatprep.subr.mxu0 0.0
    %1529 = vmatpush1.msra.mxu0 0.0
    %1530 = vmatprep.subr.mxu0 0.0
    %1531 = vmatpush1.msra.mxu0 0.0
    %1532 = vmatprep.subr.mxu0 0.0
    %1533 = vmatpush1.msra.mxu0 0.0
    %1534 = vmatprep.subr.mxu0 0.0
    %1535 = vmatpush1.msra.mxu0 0.0
    %1536 = vmatprep.subr.mxu0 0.0
    %1537 = vmatpush1.msra.mxu0 0.0
    %1538 = vmatprep.subr.mxu0 0.0
    %1539 = vmatpush1.msra.mxu0 0.0
    %1540 = vmatprep.subr.mxu0 0.0
    %1541 = vmatpush1.msra.mxu0 0.0
    %1542 = vmatprep.subr.mxu0 0.0
    %1543 = vmatpush1.msra.mxu0 0.0
    %1544 = vmatprep.subr.mxu0 0.0
    %1545 = vmatpush1.msra.mxu0 0.0
    %1546 = vmatprep.subr.mxu0 0.0
    %1547 = vmatpush1.msra.mxu0 0.0
    %1548 = vmatprep.subr.mxu0 0.0
    %1549 = vmatpush1.msra.mxu0 0.0
    %1550 = vmatprep.subr.mxu0 0.0
    %1551 = vmatpush1.msra.mxu0 0.0
    %1552 = vmatprep.subr.mxu0 0.0
    %1553 = vmatpush1.msra.mxu0 0.0
    %1554 = vmatprep.mubr.f32.mxu0 0.0
    %1555 = vmatmul.mubr.f32.gmra.mrb[0].mxu0 %v1479
    %v1556 = vpop.f32.mrb[0].mxu0
    %v1557 = vadd.f32 0.0, %v1556
    %v1558 = vpop.f32.mrb[0].mxu0
    %1559 = vmatprep.mubr.f32.mxu0 0.0
    %1560 = vmatmul.mubr.f32.gmra.mrb[0].mxu0 %v1482
    %v1561 = vpop.f32.mrb[0].mxu0
    %v1562 = vadd.f32 0.0, %v1561
    %v1563 = vpop.f32.mrb[0].mxu0
    %1564 = vmatprep.mubr.f32.mxu0 0.0
    %1565 = vmatmul.mubr.f32.gmra.mrb[0].mxu0 %v1485
    %v1566 = vpop.f32.mrb[0].mxu0
    %v1567 = vadd.f32 0.0, %v1566
    %v1568 = vpop.f32.mrb[0].mxu0
    %1569 = vmatprep.mubr.f32.mxu0 0.0
    %1570 = vmatmul.mubr.f32.gmra.mrb[0].mxu0 %v1488
    %v1571 = vpop.f32.mrb[0].mxu0
    %v1572 = vadd.f32 0.0, %v1571
    %v1573 = vpop.f32.mrb[0].mxu0
    %1574 = vdwg.mxu0
    %v1575 = vadd.f32 %v1469, %v1557
    %v1576 = vadd.f32 %v1470, %v1562
    %v1577 = vadd.f32 %v1471, %v1567
    %v1578 = vadd.f32 %v1472, %v1572
    %vm1579 = vcmp.gt.f32.partialorder %v1575, 0.0
    %vm1580 = vcmp.gt.f32.partialorder %v1576, 0.0
    %vm1581 = vcmp.gt.f32.partialorder %v1577, 0.0
    %vm1582 = vcmp.gt.f32.partialorder %v1578, 0.0
    %v1583 = vmul.f32 %v1575, 0.01
    %v1584 = vmul.f32 %v1576, 0.01
    %v1585 = vmul.f32 %v1577, 0.01
    %v1586 = vmul.f32 %v1578, 0.01
    %v1587 = vsel %vm1579, %v1575, %v1583
    %v1588 = vsel %vm1580, %v1576, %v1584
    %v1589 = vsel %vm1581, %v1577, %v1585
    %v1590 = vsel %vm1582, %v1578, %v1586
    %s1591 = scalar_lea.vmem %s3, 96
    %v1592 = vld [vmem:[%s1591] sm:$0xff]
    %v1593 = vld [vmem:[%s1591 + $0x8] sm:$0xff]
    %v1594 = vld [vmem:[%s1591 + $0x10] sm:$0xff]
    %v1595 = vld [vmem:[%s1591 + $0x18] sm:$0xff]
    %v1597 = vsel %vm955, %v1592, 0
    %v1600 = vsel %vm955, %v1593, 0
    %v1603 = vsel %vm955, %v1594, 0
    %v1606 = vsel %vm955, %v1595, 0
    %1608 = vmatprep.subr.mxu0 0.0
    %1609 = vmatpush1.msra.mxu0 %v1587
    %1610 = vmatprep.subr.mxu0 0.0
    %1611 = vmatpush1.msra.mxu0 %v1588
    %1612 = vmatprep.subr.mxu0 0.0
    %1613 = vmatpush1.msra.mxu0 %v1589
    %1614 = vmatprep.subr.mxu0 0.0
    %1615 = vmatpush1.msra.mxu0 %v1590
    %1616 = vmatprep.subr.mxu0 0.0
    %1617 = vmatpush1.msra.mxu0 0.0
    %1618 = vmatprep.subr.mxu0 0.0
    %1619 = vmatpush1.msra.mxu0 0.0
    %1620 = vmatprep.subr.mxu0 0.0
    %1621 = vmatpush1.msra.mxu0 0.0
    %1622 = vmatprep.subr.mxu0 0.0
    %1623 = vmatpush1.msra.mxu0 0.0
    %1624 = vmatprep.subr.mxu0 0.0
    %1625 = vmatpush1.msra.mxu0 0.0
    %1626 = vmatprep.subr.mxu0 0.0
    %1627 = vmatpush1.msra.mxu0 0.0
    %1628 = vmatprep.subr.mxu0 0.0
    %1629 = vmatpush1.msra.mxu0 0.0
    %1630 = vmatprep.subr.mxu0 0.0
    %1631 = vmatpush1.msra.mxu0 0.0
    %1632 = vmatprep.subr.mxu0 0.0
    %1633 = vmatpush1.msra.mxu0 0.0
    %1634 = vmatprep.subr.mxu0 0.0
    %1635 = vmatpush1.msra.mxu0 0.0
    %1636 = vmatprep.subr.mxu0 0.0
    %1637 = vmatpush1.msra.mxu0 0.0
    %1638 = vmatprep.subr.mxu0 0.0
    %1639 = vmatpush1.msra.mxu0 0.0
    %1640 = vmatprep.subr.mxu0 0.0
    %1641 = vmatpush1.msra.mxu0 0.0
    %1642 = vmatprep.subr.mxu0 0.0
    %1643 = vmatpush1.msra.mxu0 0.0
    %1644 = vmatprep.subr.mxu0 0.0
    %1645 = vmatpush1.msra.mxu0 0.0
    %1646 = vmatprep.subr.mxu0 0.0
    %1647 = vmatpush1.msra.mxu0 0.0
    %1648 = vmatprep.subr.mxu0 0.0
    %1649 = vmatpush1.msra.mxu0 0.0
    %1650 = vmatprep.subr.mxu0 0.0
    %1651 = vmatpush1.msra.mxu0 0.0
    %1652 = vmatprep.subr.mxu0 0.0
    %1653 = vmatpush1.msra.mxu0 0.0
    %1654 = vmatprep.subr.mxu0 0.0
    %1655 = vmatpush1.msra.mxu0 0.0
    %1656 = vmatprep.subr.mxu0 0.0
    %1657 = vmatpush1.msra.mxu0 0.0
    %1658 = vmatprep.subr.mxu0 0.0
    %1659 = vmatpush1.msra.mxu0 0.0
    %1660 = vmatprep.subr.mxu0 0.0
    %1661 = vmatpush1.msra.mxu0 0.0
    %1662 = vmatprep.subr.mxu0 0.0
    %1663 = vmatpush1.msra.mxu0 0.0
    %1664 = vmatprep.subr.mxu0 0.0
    %1665 = vmatpush1.msra.mxu0 0.0
    %1666 = vmatprep.subr.mxu0 0.0
    %1667 = vmatpush1.msra.mxu0 0.0
    %1668 = vmatprep.subr.mxu0 0.0
    %1669 = vmatpush1.msra.mxu0 0.0
    %1670 = vmatprep.subr.mxu0 0.0
    %1671 = vmatpush1.msra.mxu0 0.0
    %1672 = vmatprep.mubr.f32.mxu0 0.0
    %1673 = vmatmul.mubr.f32.gmra.mrb[0].mxu0 %v1597
    %v1674 = vpop.f32.mrb[0].mxu0
    %v1675 = vadd.f32 %v731, %v1674
    %v1676 = vpop.f32.mrb[0].mxu0
    %1677 = vmatprep.mubr.f32.mxu0 0.0
    %1678 = vmatmul.mubr.f32.gmra.mrb[0].mxu0 %v1600
    %v1679 = vpop.f32.mrb[0].mxu0
    %v1680 = vadd.f32 %v736, %v1679
    %v1681 = vpop.f32.mrb[0].mxu0
    %1682 = vmatprep.mubr.f32.mxu0 0.0
    %1683 = vmatmul.mubr.f32.gmra.mrb[0].mxu0 %v1603
    %v1684 = vpop.f32.mrb[0].mxu0
    %v1685 = vadd.f32 %v741, %v1684
    %v1686 = vpop.f32.mrb[0].mxu0
    %1687 = vmatprep.mubr.f32.mxu0 0.0
    %1688 = vmatmul.mubr.f32.gmra.mrb[0].mxu0 %v1606
    %v1689 = vpop.f32.mrb[0].mxu0
    %v1690 = vadd.f32 %v746, %v1689
    %v1691 = vpop.f32.mrb[0].mxu0
    %1692 = vdwg.mxu0
    %s1693 = scalar_lea.vmem %s6, 96
    %v1694 = vld [vmem:[%s1693] sm:$0xff]
    %v1695 = vld [vmem:[%s1693 + $0x8] sm:$0xff]
    %v1696 = vld [vmem:[%s1693 + $0x10] sm:$0xff]
    %v1697 = vld [vmem:[%s1693 + $0x18] sm:$0xff]
    %1699 = vset.pattern.permute.xlu0 0
    %1700 = vperm.xlu0 %1699, %v1694
    %v1701 = vpop.permute.xlu0 %1700
    %1704 = vset.pattern.permute.xlu0 0
    %1705 = vperm.xlu0 %1704, %v1695
    %v1706 = vpop.permute.xlu0 %1705
    %1709 = vset.pattern.permute.xlu0 0
    %1710 = vperm.xlu0 %1709, %v1696
    %v1711 = vpop.permute.xlu0 %1710
    %1714 = vset.pattern.permute.xlu0 0
    %1715 = vperm.xlu0 %1714, %v1697
    %v1716 = vpop.permute.xlu0 %1715
    %v1718 = vadd.f32 %v1675, %v1701
    %v1719 = vadd.f32 %v1680, %v1706
    %v1720 = vadd.f32 %v1685, %v1711
    %v1721 = vadd.f32 %v1690, %v1716
    %s1722 = scalar_lea.vmem %s4, 96
    %v1723 = vld [vmem:[%s1722] sm:$0xff]
    %v1724 = vld [vmem:[%s1722 + $0x8] sm:$0xff]
    %v1725 = vld [vmem:[%s1722 + $0x10] sm:$0xff]
    %v1726 = vld [vmem:[%s1722 + $0x18] sm:$0xff]
    %v1728 = vsel %vm955, %v1723, 0
    %v1731 = vsel %vm955, %v1724, 0
    %v1734 = vsel %vm955, %v1725, 0
    %v1737 = vsel %vm955, %v1726, 0
    %1739 = vmatprep.subr.mxu0 0.0
    %1740 = vmatpush1.msra.mxu0 %v1338
    %1741 = vmatprep.subr.mxu0 0.0
    %1742 = vmatpush1.msra.mxu0 %v1339
    %1743 = vmatprep.subr.mxu0 0.0
    %1744 = vmatpush1.msra.mxu0 %v1340
    %1745 = vmatprep.subr.mxu0 0.0
    %1746 = vmatpush1.msra.mxu0 %v1341
    %1747 = vmatprep.subr.mxu0 0.0
    %1748 = vmatpush1.msra.mxu0 0.0
    %1749 = vmatprep.subr.mxu0 0.0
    %1750 = vmatpush1.msra.mxu0 0.0
    %1751 = vmatprep.subr.mxu0 0.0
    %1752 = vmatpush1.msra.mxu0 0.0
    %1753 = vmatprep.subr.mxu0 0.0
    %1754 = vmatpush1.msra.mxu0 0.0
    %1755 = vmatprep.subr.mxu0 0.0
    %1756 = vmatpush1.msra.mxu0 0.0
    %1757 = vmatprep.subr.mxu0 0.0
    %1758 = vmatpush1.msra.mxu0 0.0
    %1759 = vmatprep.subr.mxu0 0.0
    %1760 = vmatpush1.msra.mxu0 0.0
    %1761 = vmatprep.subr.mxu0 0.0
    %1762 = vmatpush1.msra.mxu0 0.0
    %1763 = vmatprep.subr.mxu0 0.0
    %1764 = vmatpush1.msra.mxu0 0.0
    %1765 = vmatprep.subr.mxu0 0.0
    %1766 = vmatpush1.msra.mxu0 0.0
    %1767 = vmatprep.subr.mxu0 0.0
    %1768 = vmatpush1.msra.mxu0 0.0
    %1769 = vmatprep.subr.mxu0 0.0
    %1770 = vmatpush1.msra.mxu0 0.0
    %1771 = vmatprep.subr.mxu0 0.0
    %1772 = vmatpush1.msra.mxu0 0.0
    %1773 = vmatprep.subr.mxu0 0.0
    %1774 = vmatpush1.msra.mxu0 0.0
    %1775 = vmatprep.subr.mxu0 0.0
    %1776 = vmatpush1.msra.mxu0 0.0
    %1777 = vmatprep.subr.mxu0 0.0
    %1778 = vmatpush1.msra.mxu0 0.0
    %1779 = vmatprep.subr.mxu0 0.0
    %1780 = vmatpush1.msra.mxu0 0.0
    %1781 = vmatprep.subr.mxu0 0.0
    %1782 = vmatpush1.msra.mxu0 0.0
    %1783 = vmatprep.subr.mxu0 0.0
    %1784 = vmatpush1.msra.mxu0 0.0
    %1785 = vmatprep.subr.mxu0 0.0
    %1786 = vmatpush1.msra.mxu0 0.0
    %1787 = vmatprep.subr.mxu0 0.0
    %1788 = vmatpush1.msra.mxu0 0.0
    %1789 = vmatprep.subr.mxu0 0.0
    %1790 = vmatpush1.msra.mxu0 0.0
    %1791 = vmatprep.subr.mxu0 0.0
    %1792 = vmatpush1.msra.mxu0 0.0
    %1793 = vmatprep.subr.mxu0 0.0
    %1794 = vmatpush1.msra.mxu0 0.0
    %1795 = vmatprep.subr.mxu0 0.0
    %1796 = vmatpush1.msra.mxu0 0.0
    %1797 = vmatprep.subr.mxu0 0.0
    %1798 = vmatpush1.msra.mxu0 0.0
    %1799 = vmatprep.subr.mxu0 0.0
    %1800 = vmatpush1.msra.mxu0 0.0
    %1801 = vmatprep.subr.mxu0 0.0
    %1802 = vmatpush1.msra.mxu0 0.0
    %1803 = vmatprep.mubr.f32.mxu0 0.0
    %1804 = vmatmul.mubr.f32.gmra.mrb[0].mxu0 %v1728
    %v1805 = vpop.f32.mrb[0].mxu0
    %v1806 = vadd.f32 0.0, %v1805
    %v1807 = vpop.f32.mrb[0].mxu0
    %1808 = vmatprep.mubr.f32.mxu0 0.0
    %1809 = vmatmul.mubr.f32.gmra.mrb[0].mxu0 %v1731
    %v1810 = vpop.f32.mrb[0].mxu0
    %v1811 = vadd.f32 0.0, %v1810
    %v1812 = vpop.f32.mrb[0].mxu0
    %1813 = vmatprep.mubr.f32.mxu0 0.0
    %1814 = vmatmul.mubr.f32.gmra.mrb[0].mxu0 %v1734
    %v1815 = vpop.f32.mrb[0].mxu0
    %v1816 = vadd.f32 0.0, %v1815
    %v1817 = vpop.f32.mrb[0].mxu0
    %1818 = vmatprep.mubr.f32.mxu0 0.0
    %1819 = vmatmul.mubr.f32.gmra.mrb[0].mxu0 %v1737
    %v1820 = vpop.f32.mrb[0].mxu0
    %v1821 = vadd.f32 0.0, %v1820
    %v1822 = vpop.f32.mrb[0].mxu0
    %1823 = vdwg.mxu0
    %v1824 = vadd.f32 %v1718, %v1806
    %v1825 = vadd.f32 %v1719, %v1811
    %v1826 = vadd.f32 %v1720, %v1816
    %v1827 = vadd.f32 %v1721, %v1821
    %vm1828 = vcmp.gt.f32.partialorder %v1824, 0.0
    %vm1829 = vcmp.gt.f32.partialorder %v1825, 0.0
    %vm1830 = vcmp.gt.f32.partialorder %v1826, 0.0
    %vm1831 = vcmp.gt.f32.partialorder %v1827, 0.0
    %v1832 = vmul.f32 %v1824, 0.01
    %v1833 = vmul.f32 %v1825, 0.01
    %v1834 = vmul.f32 %v1826, 0.01
    %v1835 = vmul.f32 %v1827, 0.01
    %v1836 = vsel %vm1828, %v1824, %v1832
    %v1837 = vsel %vm1829, %v1825, %v1833
    %v1838 = vsel %vm1830, %v1826, %v1834
    %v1839 = vsel %vm1831, %v1827, %v1835
    %s1840 = scalar_lea.vmem %s3, 128
    %v1841 = vld [vmem:[%s1840] sm:$0xff]
    %v1842 = vld [vmem:[%s1840 + $0x8] sm:$0xff]
    %v1843 = vld [vmem:[%s1840 + $0x10] sm:$0xff]
    %v1844 = vld [vmem:[%s1840 + $0x18] sm:$0xff]
    %v1846 = vsel %vm955, %v1841, 0
    %v1849 = vsel %vm955, %v1842, 0
    %v1852 = vsel %vm955, %v1843, 0
    %v1855 = vsel %vm955, %v1844, 0
    %1857 = vmatprep.subr.mxu0 0.0
    %1858 = vmatpush1.msra.mxu0 %v1836
    %1859 = vmatprep.subr.mxu0 0.0
    %1860 = vmatpush1.msra.mxu0 %v1837
    %1861 = vmatprep.subr.mxu0 0.0
    %1862 = vmatpush1.msra.mxu0 %v1838
    %1863 = vmatprep.subr.mxu0 0.0
    %1864 = vmatpush1.msra.mxu0 %v1839
    %1865 = vmatprep.subr.mxu0 0.0
    %1866 = vmatpush1.msra.mxu0 0.0
    %1867 = vmatprep.subr.mxu0 0.0
    %1868 = vmatpush1.msra.mxu0 0.0
    %1869 = vmatprep.subr.mxu0 0.0
    %1870 = vmatpush1.msra.mxu0 0.0
    %1871 = vmatprep.subr.mxu0 0.0
    %1872 = vmatpush1.msra.mxu0 0.0
    %1873 = vmatprep.subr.mxu0 0.0
    %1874 = vmatpush1.msra.mxu0 0.0
    %1875 = vmatprep.subr.mxu0 0.0
    %1876 = vmatpush1.msra.mxu0 0.0
    %1877 = vmatprep.subr.mxu0 0.0
    %1878 = vmatpush1.msra.mxu0 0.0
    %1879 = vmatprep.subr.mxu0 0.0
    %1880 = vmatpush1.msra.mxu0 0.0
    %1881 = vmatprep.subr.mxu0 0.0
    %1882 = vmatpush1.msra.mxu0 0.0
    %1883 = vmatprep.subr.mxu0 0.0
    %1884 = vmatpush1.msra.mxu0 0.0
    %1885 = vmatprep.subr.mxu0 0.0
    %1886 = vmatpush1.msra.mxu0 0.0
    %1887 = vmatprep.subr.mxu0 0.0
    %1888 = vmatpush1.msra.mxu0 0.0
    %1889 = vmatprep.subr.mxu0 0.0
    %1890 = vmatpush1.msra.mxu0 0.0
    %1891 = vmatprep.subr.mxu0 0.0
    %1892 = vmatpush1.msra.mxu0 0.0
    %1893 = vmatprep.subr.mxu0 0.0
    %1894 = vmatpush1.msra.mxu0 0.0
    %1895 = vmatprep.subr.mxu0 0.0
    %1896 = vmatpush1.msra.mxu0 0.0
    %1897 = vmatprep.subr.mxu0 0.0
    %1898 = vmatpush1.msra.mxu0 0.0
    %1899 = vmatprep.subr.mxu0 0.0
    %1900 = vmatpush1.msra.mxu0 0.0
    %1901 = vmatprep.subr.mxu0 0.0
    %1902 = vmatpush1.msra.mxu0 0.0
    %1903 = vmatprep.subr.mxu0 0.0
    %1904 = vmatpush1.msra.mxu0 0.0
    %1905 = vmatprep.subr.mxu0 0.0
    %1906 = vmatpush1.msra.mxu0 0.0
    %1907 = vmatprep.subr.mxu0 0.0
    %1908 = vmatpush1.msra.mxu0 0.0
    %1909 = vmatprep.subr.mxu0 0.0
    %1910 = vmatpush1.msra.mxu0 0.0
    %1911 = vmatprep.subr.mxu0 0.0
    %1912 = vmatpush1.msra.mxu0 0.0
    %1913 = vmatprep.subr.mxu0 0.0
    %1914 = vmatpush1.msra.mxu0 0.0
    %1915 = vmatprep.subr.mxu0 0.0
    %1916 = vmatpush1.msra.mxu0 0.0
    %1917 = vmatprep.subr.mxu0 0.0
    %1918 = vmatpush1.msra.mxu0 0.0
    %1919 = vmatprep.subr.mxu0 0.0
    %1920 = vmatpush1.msra.mxu0 0.0
    %1921 = vmatprep.mubr.f32.mxu0 0.0
    %1922 = vmatmul.mubr.f32.gmra.mrb[0].mxu0 %v1846
    %v1923 = vpop.f32.mrb[0].mxu0
    %v1924 = vadd.f32 %v751, %v1923
    %v1925 = vpop.f32.mrb[0].mxu0
    %1926 = vmatprep.mubr.f32.mxu0 0.0
    %1927 = vmatmul.mubr.f32.gmra.mrb[0].mxu0 %v1849
    %v1928 = vpop.f32.mrb[0].mxu0
    %v1929 = vadd.f32 %v756, %v1928
    %v1930 = vpop.f32.mrb[0].mxu0
    %1931 = vmatprep.mubr.f32.mxu0 0.0
    %1932 = vmatmul.mubr.f32.gmra.mrb[0].mxu0 %v1852
    %v1933 = vpop.f32.mrb[0].mxu0
    %v1934 = vadd.f32 %v761, %v1933
    %v1935 = vpop.f32.mrb[0].mxu0
    %1936 = vmatprep.mubr.f32.mxu0 0.0
    %1937 = vmatmul.mubr.f32.gmra.mrb[0].mxu0 %v1855
    %v1938 = vpop.f32.mrb[0].mxu0
    %v1939 = vadd.f32 %v766, %v1938
    %v1940 = vpop.f32.mrb[0].mxu0
    %1941 = vdwg.mxu0
    %s1942 = scalar_lea.vmem %s6, 128
    %v1943 = vld [vmem:[%s1942] sm:$0xff]
    %v1944 = vld [vmem:[%s1942 + $0x8] sm:$0xff]
    %v1945 = vld [vmem:[%s1942 + $0x10] sm:$0xff]
    %v1946 = vld [vmem:[%s1942 + $0x18] sm:$0xff]
    %1948 = vset.pattern.permute.xlu0 0
    %1949 = vperm.xlu0 %1948, %v1943
    %v1950 = vpop.permute.xlu0 %1949
    %1953 = vset.pattern.permute.xlu0 0
    %1954 = vperm.xlu0 %1953, %v1944
    %v1955 = vpop.permute.xlu0 %1954
    %1958 = vset.pattern.permute.xlu0 0
    %1959 = vperm.xlu0 %1958, %v1945
    %v1960 = vpop.permute.xlu0 %1959
    %1963 = vset.pattern.permute.xlu0 0
    %1964 = vperm.xlu0 %1963, %v1946
    %v1965 = vpop.permute.xlu0 %1964
    %v1967 = vadd.f32 %v1924, %v1950
    %v1968 = vadd.f32 %v1929, %v1955
    %v1969 = vadd.f32 %v1934, %v1960
    %v1970 = vadd.f32 %v1939, %v1965
    %s1971 = scalar_lea.vmem %s4, 128
    %v1972 = vld [vmem:[%s1971] sm:$0xff]
    %v1973 = vld [vmem:[%s1971 + $0x8] sm:$0xff]
    %v1974 = vld [vmem:[%s1971 + $0x10] sm:$0xff]
    %v1975 = vld [vmem:[%s1971 + $0x18] sm:$0xff]
    %v1977 = vsel %vm955, %v1972, 0
    %v1980 = vsel %vm955, %v1973, 0
    %v1983 = vsel %vm955, %v1974, 0
    %v1986 = vsel %vm955, %v1975, 0
    %1988 = vmatprep.subr.mxu0 0.0
    %1989 = vmatpush1.msra.mxu0 %v1587
    %1990 = vmatprep.subr.mxu0 0.0
    %1991 = vmatpush1.msra.mxu0 %v1588
    %1992 = vmatprep.subr.mxu0 0.0
    %1993 = vmatpush1.msra.mxu0 %v1589
    %1994 = vmatprep.subr.mxu0 0.0
    %1995 = vmatpush1.msra.mxu0 %v1590
    %1996 = vmatprep.subr.mxu0 0.0
    %1997 = vmatpush1.msra.mxu0 0.0
    %1998 = vmatprep.subr.mxu0 0.0
    %1999 = vmatpush1.msra.mxu0 0.0
    %2000 = vmatprep.subr.mxu0 0.0
    %2001 = vmatpush1.msra.mxu0 0.0
    %2002 = vmatprep.subr.mxu0 0.0
    %2003 = vmatpush1.msra.mxu0 0.0
    %2004 = vmatprep.subr.mxu0 0.0
    %2005 = vmatpush1.msra.mxu0 0.0
    %2006 = vmatprep.subr.mxu0 0.0
    %2007 = vmatpush1.msra.mxu0 0.0
    %2008 = vmatprep.subr.mxu0 0.0
    %2009 = vmatpush1.msra.mxu0 0.0
    %2010 = vmatprep.subr.mxu0 0.0
    %2011 = vmatpush1.msra.mxu0 0.0
    %2012 = vmatprep.subr.mxu0 0.0
    %2013 = vmatpush1.msra.mxu0 0.0
    %2014 = vmatprep.subr.mxu0 0.0
    %2015 = vmatpush1.msra.mxu0 0.0
    %2016 = vmatprep.subr.mxu0 0.0
    %2017 = vmatpush1.msra.mxu0 0.0
    %2018 = vmatprep.subr.mxu0 0.0
    %2019 = vmatpush1.msra.mxu0 0.0
    %2020 = vmatprep.subr.mxu0 0.0
    %2021 = vmatpush1.msra.mxu0 0.0
    %2022 = vmatprep.subr.mxu0 0.0
    %2023 = vmatpush1.msra.mxu0 0.0
    %2024 = vmatprep.subr.mxu0 0.0
    %2025 = vmatpush1.msra.mxu0 0.0
    %2026 = vmatprep.subr.mxu0 0.0
    %2027 = vmatpush1.msra.mxu0 0.0
    %2028 = vmatprep.subr.mxu0 0.0
    %2029 = vmatpush1.msra.mxu0 0.0
    %2030 = vmatprep.subr.mxu0 0.0
    %2031 = vmatpush1.msra.mxu0 0.0
    %2032 = vmatprep.subr.mxu0 0.0
    %2033 = vmatpush1.msra.mxu0 0.0
    %2034 = vmatprep.subr.mxu0 0.0
    %2035 = vmatpush1.msra.mxu0 0.0
    %2036 = vmatprep.subr.mxu0 0.0
    %2037 = vmatpush1.msra.mxu0 0.0
    %2038 = vmatprep.subr.mxu0 0.0
    %2039 = vmatpush1.msra.mxu0 0.0
    %2040 = vmatprep.subr.mxu0 0.0
    %2041 = vmatpush1.msra.mxu0 0.0
    %2042 = vmatprep.subr.mxu0 0.0
    %2043 = vmatpush1.msra.mxu0 0.0
    %2044 = vmatprep.subr.mxu0 0.0
    %2045 = vmatpush1.msra.mxu0 0.0
    %2046 = vmatprep.subr.mxu0 0.0
    %2047 = vmatpush1.msra.mxu0 0.0
    %2048 = vmatprep.subr.mxu0 0.0
    %2049 = vmatpush1.msra.mxu0 0.0
    %2050 = vmatprep.subr.mxu0 0.0
    %2051 = vmatpush1.msra.mxu0 0.0
    %2052 = vmatprep.mubr.f32.mxu0 0.0
    %2053 = vmatmul.mubr.f32.gmra.mrb[0].mxu0 %v1977
    %v2054 = vpop.f32.mrb[0].mxu0
    %v2055 = vadd.f32 0.0, %v2054
    %v2056 = vpop.f32.mrb[0].mxu0
    %2057 = vmatprep.mubr.f32.mxu0 0.0
    %2058 = vmatmul.mubr.f32.gmra.mrb[0].mxu0 %v1980
    %v2059 = vpop.f32.mrb[0].mxu0
    %v2060 = vadd.f32 0.0, %v2059
    %v2061 = vpop.f32.mrb[0].mxu0
    %2062 = vmatprep.mubr.f32.mxu0 0.0
    %2063 = vmatmul.mubr.f32.gmra.mrb[0].mxu0 %v1983
    %v2064 = vpop.f32.mrb[0].mxu0
    %v2065 = vadd.f32 0.0, %v2064
    %v2066 = vpop.f32.mrb[0].mxu0
    %2067 = vmatprep.mubr.f32.mxu0 0.0
    %2068 = vmatmul.mubr.f32.gmra.mrb[0].mxu0 %v1986
    %v2069 = vpop.f32.mrb[0].mxu0
    %v2070 = vadd.f32 0.0, %v2069
    %v2071 = vpop.f32.mrb[0].mxu0
    %2072 = vdwg.mxu0
    %v2073 = vadd.f32 %v1967, %v2055
    %v2074 = vadd.f32 %v1968, %v2060
    %v2075 = vadd.f32 %v1969, %v2065
    %v2076 = vadd.f32 %v1970, %v2070
    %vm2077 = vcmp.gt.f32.partialorder %v2073, 0.0
    %vm2078 = vcmp.gt.f32.partialorder %v2074, 0.0
    %vm2079 = vcmp.gt.f32.partialorder %v2075, 0.0
    %vm2080 = vcmp.gt.f32.partialorder %v2076, 0.0
    %v2081 = vmul.f32 %v2073, 0.01
    %v2082 = vmul.f32 %v2074, 0.01
    %v2083 = vmul.f32 %v2075, 0.01
    %v2084 = vmul.f32 %v2076, 0.01
    %v2085 = vsel %vm2077, %v2073, %v2081
    %v2086 = vsel %vm2078, %v2074, %v2082
    %v2087 = vsel %vm2079, %v2075, %v2083
    %v2088 = vsel %vm2080, %v2076, %v2084
    %s2089 = scalar_lea.vmem %s3, 160
    %v2090 = vld [vmem:[%s2089] sm:$0xff]
    %v2091 = vld [vmem:[%s2089 + $0x8] sm:$0xff]
    %v2092 = vld [vmem:[%s2089 + $0x10] sm:$0xff]
    %v2093 = vld [vmem:[%s2089 + $0x18] sm:$0xff]
    %v2095 = vsel %vm955, %v2090, 0
    %v2098 = vsel %vm955, %v2091, 0
    %v2101 = vsel %vm955, %v2092, 0
    %v2104 = vsel %vm955, %v2093, 0
    %2106 = vmatprep.subr.mxu0 0.0
    %2107 = vmatpush1.msra.mxu0 %v2085
    %2108 = vmatprep.subr.mxu0 0.0
    %2109 = vmatpush1.msra.mxu0 %v2086
    %2110 = vmatprep.subr.mxu0 0.0
    %2111 = vmatpush1.msra.mxu0 %v2087
    %2112 = vmatprep.subr.mxu0 0.0
    %2113 = vmatpush1.msra.mxu0 %v2088
    %2114 = vmatprep.subr.mxu0 0.0
    %2115 = vmatpush1.msra.mxu0 0.0
    %2116 = vmatprep.subr.mxu0 0.0
    %2117 = vmatpush1.msra.mxu0 0.0
    %2118 = vmatprep.subr.mxu0 0.0
    %2119 = vmatpush1.msra.mxu0 0.0
    %2120 = vmatprep.subr.mxu0 0.0
    %2121 = vmatpush1.msra.mxu0 0.0
    %2122 = vmatprep.subr.mxu0 0.0
    %2123 = vmatpush1.msra.mxu0 0.0
    %2124 = vmatprep.subr.mxu0 0.0
    %2125 = vmatpush1.msra.mxu0 0.0
    %2126 = vmatprep.subr.mxu0 0.0
    %2127 = vmatpush1.msra.mxu0 0.0
    %2128 = vmatprep.subr.mxu0 0.0
    %2129 = vmatpush1.msra.mxu0 0.0
    %2130 = vmatprep.subr.mxu0 0.0
    %2131 = vmatpush1.msra.mxu0 0.0
    %2132 = vmatprep.subr.mxu0 0.0
    %2133 = vmatpush1.msra.mxu0 0.0
    %2134 = vmatprep.subr.mxu0 0.0
    %2135 = vmatpush1.msra.mxu0 0.0
    %2136 = vmatprep.subr.mxu0 0.0
    %2137 = vmatpush1.msra.mxu0 0.0
    %2138 = vmatprep.subr.mxu0 0.0
    %2139 = vmatpush1.msra.mxu0 0.0
    %2140 = vmatprep.subr.mxu0 0.0
    %2141 = vmatpush1.msra.mxu0 0.0
    %2142 = vmatprep.subr.mxu0 0.0
    %2143 = vmatpush1.msra.mxu0 0.0
    %2144 = vmatprep.subr.mxu0 0.0
    %2145 = vmatpush1.msra.mxu0 0.0
    %2146 = vmatprep.subr.mxu0 0.0
    %2147 = vmatpush1.msra.mxu0 0.0
    %2148 = vmatprep.subr.mxu0 0.0
    %2149 = vmatpush1.msra.mxu0 0.0
    %2150 = vmatprep.subr.mxu0 0.0
    %2151 = vmatpush1.msra.mxu0 0.0
    %2152 = vmatprep.subr.mxu0 0.0
    %2153 = vmatpush1.msra.mxu0 0.0
    %2154 = vmatprep.subr.mxu0 0.0
    %2155 = vmatpush1.msra.mxu0 0.0
    %2156 = vmatprep.subr.mxu0 0.0
    %2157 = vmatpush1.msra.mxu0 0.0
    %2158 = vmatprep.subr.mxu0 0.0
    %2159 = vmatpush1.msra.mxu0 0.0
    %2160 = vmatprep.subr.mxu0 0.0
    %2161 = vmatpush1.msra.mxu0 0.0
    %2162 = vmatprep.subr.mxu0 0.0
    %2163 = vmatpush1.msra.mxu0 0.0
    %2164 = vmatprep.subr.mxu0 0.0
    %2165 = vmatpush1.msra.mxu0 0.0
    %2166 = vmatprep.subr.mxu0 0.0
    %2167 = vmatpush1.msra.mxu0 0.0
    %2168 = vmatprep.subr.mxu0 0.0
    %2169 = vmatpush1.msra.mxu0 0.0
    %2170 = vmatprep.mubr.f32.mxu0 0.0
    %2171 = vmatmul.mubr.f32.gmra.mrb[0].mxu0 %v2095
    %v2172 = vpop.f32.mrb[0].mxu0
    %v2173 = vadd.f32 %v771, %v2172
    %v2174 = vpop.f32.mrb[0].mxu0
    %2175 = vmatprep.mubr.f32.mxu0 0.0
    %2176 = vmatmul.mubr.f32.gmra.mrb[0].mxu0 %v2098
    %v2177 = vpop.f32.mrb[0].mxu0
    %v2178 = vadd.f32 %v776, %v2177
    %v2179 = vpop.f32.mrb[0].mxu0
    %2180 = vmatprep.mubr.f32.mxu0 0.0
    %2181 = vmatmul.mubr.f32.gmra.mrb[0].mxu0 %v2101
    %v2182 = vpop.f32.mrb[0].mxu0
    %v2183 = vadd.f32 %v781, %v2182
    %v2184 = vpop.f32.mrb[0].mxu0
    %2185 = vmatprep.mubr.f32.mxu0 0.0
    %2186 = vmatmul.mubr.f32.gmra.mrb[0].mxu0 %v2104
    %v2187 = vpop.f32.mrb[0].mxu0
    %v2188 = vadd.f32 %v786, %v2187
    %v2189 = vpop.f32.mrb[0].mxu0
    %2190 = vdwg.mxu0
    %s2191 = scalar_lea.vmem %s6, 160
    %v2192 = vld [vmem:[%s2191] sm:$0xff]
    %v2193 = vld [vmem:[%s2191 + $0x8] sm:$0xff]
    %v2194 = vld [vmem:[%s2191 + $0x10] sm:$0xff]
    %v2195 = vld [vmem:[%s2191 + $0x18] sm:$0xff]
    %2197 = vset.pattern.permute.xlu0 0
    %2198 = vperm.xlu0 %2197, %v2192
    %v2199 = vpop.permute.xlu0 %2198
    %2202 = vset.pattern.permute.xlu0 0
    %2203 = vperm.xlu0 %2202, %v2193
    %v2204 = vpop.permute.xlu0 %2203
    %2207 = vset.pattern.permute.xlu0 0
    %2208 = vperm.xlu0 %2207, %v2194
    %v2209 = vpop.permute.xlu0 %2208
    %2212 = vset.pattern.permute.xlu0 0
    %2213 = vperm.xlu0 %2212, %v2195
    %v2214 = vpop.permute.xlu0 %2213
    %v2216 = vadd.f32 %v2173, %v2199
    %v2217 = vadd.f32 %v2178, %v2204
    %v2218 = vadd.f32 %v2183, %v2209
    %v2219 = vadd.f32 %v2188, %v2214
    %s2220 = scalar_lea.vmem %s4, 160
    %v2221 = vld [vmem:[%s2220] sm:$0xff]
    %v2222 = vld [vmem:[%s2220 + $0x8] sm:$0xff]
    %v2223 = vld [vmem:[%s2220 + $0x10] sm:$0xff]
    %v2224 = vld [vmem:[%s2220 + $0x18] sm:$0xff]
    %v2226 = vsel %vm955, %v2221, 0
    %v2229 = vsel %vm955, %v2222, 0
    %v2232 = vsel %vm955, %v2223, 0
    %v2235 = vsel %vm955, %v2224, 0
    %2237 = vmatprep.subr.mxu0 0.0
    %2238 = vmatpush1.msra.mxu0 %v1836
    %2239 = vmatprep.subr.mxu0 0.0
    %2240 = vmatpush1.msra.mxu0 %v1837
    %2241 = vmatprep.subr.mxu0 0.0
    %2242 = vmatpush1.msra.mxu0 %v1838
    %2243 = vmatprep.subr.mxu0 0.0
    %2244 = vmatpush1.msra.mxu0 %v1839
    %2245 = vmatprep.subr.mxu0 0.0
    %2246 = vmatpush1.msra.mxu0 0.0
    %2247 = vmatprep.subr.mxu0 0.0
    %2248 = vmatpush1.msra.mxu0 0.0
    %2249 = vmatprep.subr.mxu0 0.0
    %2250 = vmatpush1.msra.mxu0 0.0
    %2251 = vmatprep.subr.mxu0 0.0
    %2252 = vmatpush1.msra.mxu0 0.0
    %2253 = vmatprep.subr.mxu0 0.0
    %2254 = vmatpush1.msra.mxu0 0.0
    %2255 = vmatprep.subr.mxu0 0.0
    %2256 = vmatpush1.msra.mxu0 0.0
    %2257 = vmatprep.subr.mxu0 0.0
    %2258 = vmatpush1.msra.mxu0 0.0
    %2259 = vmatprep.subr.mxu0 0.0
    %2260 = vmatpush1.msra.mxu0 0.0
    %2261 = vmatprep.subr.mxu0 0.0
    %2262 = vmatpush1.msra.mxu0 0.0
    %2263 = vmatprep.subr.mxu0 0.0
    %2264 = vmatpush1.msra.mxu0 0.0
    %2265 = vmatprep.subr.mxu0 0.0
    %2266 = vmatpush1.msra.mxu0 0.0
    %2267 = vmatprep.subr.mxu0 0.0
    %2268 = vmatpush1.msra.mxu0 0.0
    %2269 = vmatprep.subr.mxu0 0.0
    %2270 = vmatpush1.msra.mxu0 0.0
    %2271 = vmatprep.subr.mxu0 0.0
    %2272 = vmatpush1.msra.mxu0 0.0
    %2273 = vmatprep.subr.mxu0 0.0
    %2274 = vmatpush1.msra.mxu0 0.0
    %2275 = vmatprep.subr.mxu0 0.0
    %2276 = vmatpush1.msra.mxu0 0.0
    %2277 = vmatprep.subr.mxu0 0.0
    %2278 = vmatpush1.msra.mxu0 0.0
    %2279 = vmatprep.subr.mxu0 0.0
    %2280 = vmatpush1.msra.mxu0 0.0
    %2281 = vmatprep.subr.mxu0 0.0
    %2282 = vmatpush1.msra.mxu0 0.0
    %2283 = vmatprep.subr.mxu0 0.0
    %2284 = vmatpush1.msra.mxu0 0.0
    %2285 = vmatprep.subr.mxu0 0.0
    %2286 = vmatpush1.msra.mxu0 0.0
    %2287 = vmatprep.subr.mxu0 0.0
    %2288 = vmatpush1.msra.mxu0 0.0
    %2289 = vmatprep.subr.mxu0 0.0
    %2290 = vmatpush1.msra.mxu0 0.0
    %2291 = vmatprep.subr.mxu0 0.0
    %2292 = vmatpush1.msra.mxu0 0.0
    %2293 = vmatprep.subr.mxu0 0.0
    %2294 = vmatpush1.msra.mxu0 0.0
    %2295 = vmatprep.subr.mxu0 0.0
    %2296 = vmatpush1.msra.mxu0 0.0
    %2297 = vmatprep.subr.mxu0 0.0
    %2298 = vmatpush1.msra.mxu0 0.0
    %2299 = vmatprep.subr.mxu0 0.0
    %2300 = vmatpush1.msra.mxu0 0.0
    %2301 = vmatprep.mubr.f32.mxu0 0.0
    %2302 = vmatmul.mubr.f32.gmra.mrb[0].mxu0 %v2226
    %v2303 = vpop.f32.mrb[0].mxu0
    %v2304 = vadd.f32 0.0, %v2303
    %v2305 = vpop.f32.mrb[0].mxu0
    %2306 = vmatprep.mubr.f32.mxu0 0.0
    %2307 = vmatmul.mubr.f32.gmra.mrb[0].mxu0 %v2229
    %v2308 = vpop.f32.mrb[0].mxu0
    %v2309 = vadd.f32 0.0, %v2308
    %v2310 = vpop.f32.mrb[0].mxu0
    %2311 = vmatprep.mubr.f32.mxu0 0.0
    %2312 = vmatmul.mubr.f32.gmra.mrb[0].mxu0 %v2232
    %v2313 = vpop.f32.mrb[0].mxu0
    %v2314 = vadd.f32 0.0, %v2313
    %v2315 = vpop.f32.mrb[0].mxu0
    %2316 = vmatprep.mubr.f32.mxu0 0.0
    %2317 = vmatmul.mubr.f32.gmra.mrb[0].mxu0 %v2235
    %v2318 = vpop.f32.mrb[0].mxu0
    %v2319 = vadd.f32 0.0, %v2318
    %v2320 = vpop.f32.mrb[0].mxu0
    %2321 = vdwg.mxu0
    %v2322 = vadd.f32 %v2216, %v2304
    %v2323 = vadd.f32 %v2217, %v2309
    %v2324 = vadd.f32 %v2218, %v2314
    %v2325 = vadd.f32 %v2219, %v2319
    %vm2326 = vcmp.gt.f32.partialorder %v2322, 0.0
    %vm2327 = vcmp.gt.f32.partialorder %v2323, 0.0
    %vm2328 = vcmp.gt.f32.partialorder %v2324, 0.0
    %vm2329 = vcmp.gt.f32.partialorder %v2325, 0.0
    %v2330 = vmul.f32 %v2322, 0.01
    %v2331 = vmul.f32 %v2323, 0.01
    %v2332 = vmul.f32 %v2324, 0.01
    %v2333 = vmul.f32 %v2325, 0.01
    %v2334 = vsel %vm2326, %v2322, %v2330
    %v2335 = vsel %vm2327, %v2323, %v2331
    %v2336 = vsel %vm2328, %v2324, %v2332
    %v2337 = vsel %vm2329, %v2325, %v2333
    %s2338 = scalar_lea.vmem %s3, 192
    %v2339 = vld [vmem:[%s2338] sm:$0xff]
    %v2340 = vld [vmem:[%s2338 + $0x8] sm:$0xff]
    %v2341 = vld [vmem:[%s2338 + $0x10] sm:$0xff]
    %v2342 = vld [vmem:[%s2338 + $0x18] sm:$0xff]
    %v2344 = vsel %vm955, %v2339, 0
    %v2347 = vsel %vm955, %v2340, 0
    %v2350 = vsel %vm955, %v2341, 0
    %v2353 = vsel %vm955, %v2342, 0
    %2355 = vmatprep.subr.mxu0 0.0
    %2356 = vmatpush1.msra.mxu0 %v2334
    %2357 = vmatprep.subr.mxu0 0.0
    %2358 = vmatpush1.msra.mxu0 %v2335
    %2359 = vmatprep.subr.mxu0 0.0
    %2360 = vmatpush1.msra.mxu0 %v2336
    %2361 = vmatprep.subr.mxu0 0.0
    %2362 = vmatpush1.msra.mxu0 %v2337
    %2363 = vmatprep.subr.mxu0 0.0
    %2364 = vmatpush1.msra.mxu0 0.0
    %2365 = vmatprep.subr.mxu0 0.0
    %2366 = vmatpush1.msra.mxu0 0.0
    %2367 = vmatprep.subr.mxu0 0.0
    %2368 = vmatpush1.msra.mxu0 0.0
    %2369 = vmatprep.subr.mxu0 0.0
    %2370 = vmatpush1.msra.mxu0 0.0
    %2371 = vmatprep.subr.mxu0 0.0
    %2372 = vmatpush1.msra.mxu0 0.0
    %2373 = vmatprep.subr.mxu0 0.0
    %2374 = vmatpush1.msra.mxu0 0.0
    %2375 = vmatprep.subr.mxu0 0.0
    %2376 = vmatpush1.msra.mxu0 0.0
    %2377 = vmatprep.subr.mxu0 0.0
    %2378 = vmatpush1.msra.mxu0 0.0
    %2379 = vmatprep.subr.mxu0 0.0
    %2380 = vmatpush1.msra.mxu0 0.0
    %2381 = vmatprep.subr.mxu0 0.0
    %2382 = vmatpush1.msra.mxu0 0.0
    %2383 = vmatprep.subr.mxu0 0.0
    %2384 = vmatpush1.msra.mxu0 0.0
    %2385 = vmatprep.subr.mxu0 0.0
    %2386 = vmatpush1.msra.mxu0 0.0
    %2387 = vmatprep.subr.mxu0 0.0
    %2388 = vmatpush1.msra.mxu0 0.0
    %2389 = vmatprep.subr.mxu0 0.0
    %2390 = vmatpush1.msra.mxu0 0.0
    %2391 = vmatprep.subr.mxu0 0.0
    %2392 = vmatpush1.msra.mxu0 0.0
    %2393 = vmatprep.subr.mxu0 0.0
    %2394 = vmatpush1.msra.mxu0 0.0
    %2395 = vmatprep.subr.mxu0 0.0
    %2396 = vmatpush1.msra.mxu0 0.0
    %2397 = vmatprep.subr.mxu0 0.0
    %2398 = vmatpush1.msra.mxu0 0.0
    %2399 = vmatprep.subr.mxu0 0.0
    %2400 = vmatpush1.msra.mxu0 0.0
    %2401 = vmatprep.subr.mxu0 0.0
    %2402 = vmatpush1.msra.mxu0 0.0
    %2403 = vmatprep.subr.mxu0 0.0
    %2404 = vmatpush1.msra.mxu0 0.0
    %2405 = vmatprep.subr.mxu0 0.0
    %2406 = vmatpush1.msra.mxu0 0.0
    %2407 = vmatprep.subr.mxu0 0.0
    %2408 = vmatpush1.msra.mxu0 0.0
    %2409 = vmatprep.subr.mxu0 0.0
    %2410 = vmatpush1.msra.mxu0 0.0
    %2411 = vmatprep.subr.mxu0 0.0
    %2412 = vmatpush1.msra.mxu0 0.0
    %2413 = vmatprep.subr.mxu0 0.0
    %2414 = vmatpush1.msra.mxu0 0.0
    %2415 = vmatprep.subr.mxu0 0.0
    %2416 = vmatpush1.msra.mxu0 0.0
    %2417 = vmatprep.subr.mxu0 0.0
    %2418 = vmatpush1.msra.mxu0 0.0
    %2419 = vmatprep.mubr.f32.mxu0 0.0
    %2420 = vmatmul.mubr.f32.gmra.mrb[0].mxu0 %v2344
    %v2421 = vpop.f32.mrb[0].mxu0
    %v2422 = vadd.f32 %v791, %v2421
    %v2423 = vpop.f32.mrb[0].mxu0
    %2424 = vmatprep.mubr.f32.mxu0 0.0
    %2425 = vmatmul.mubr.f32.gmra.mrb[0].mxu0 %v2347
    %v2426 = vpop.f32.mrb[0].mxu0
    %v2427 = vadd.f32 %v796, %v2426
    %v2428 = vpop.f32.mrb[0].mxu0
    %2429 = vmatprep.mubr.f32.mxu0 0.0
    %2430 = vmatmul.mubr.f32.gmra.mrb[0].mxu0 %v2350
    %v2431 = vpop.f32.mrb[0].mxu0
    %v2432 = vadd.f32 %v801, %v2431
    %v2433 = vpop.f32.mrb[0].mxu0
    %2434 = vmatprep.mubr.f32.mxu0 0.0
    %2435 = vmatmul.mubr.f32.gmra.mrb[0].mxu0 %v2353
    %v2436 = vpop.f32.mrb[0].mxu0
    %v2437 = vadd.f32 %v806, %v2436
    %v2438 = vpop.f32.mrb[0].mxu0
    %2439 = vdwg.mxu0
    %s2440 = scalar_lea.vmem %s6, 192
    %v2441 = vld [vmem:[%s2440] sm:$0xff]
    %v2442 = vld [vmem:[%s2440 + $0x8] sm:$0xff]
    %v2443 = vld [vmem:[%s2440 + $0x10] sm:$0xff]
    %v2444 = vld [vmem:[%s2440 + $0x18] sm:$0xff]
    %2446 = vset.pattern.permute.xlu0 0
    %2447 = vperm.xlu0 %2446, %v2441
    %v2448 = vpop.permute.xlu0 %2447
    %2451 = vset.pattern.permute.xlu0 0
    %2452 = vperm.xlu0 %2451, %v2442
    %v2453 = vpop.permute.xlu0 %2452
    %2456 = vset.pattern.permute.xlu0 0
    %2457 = vperm.xlu0 %2456, %v2443
    %v2458 = vpop.permute.xlu0 %2457
    %2461 = vset.pattern.permute.xlu0 0
    %2462 = vperm.xlu0 %2461, %v2444
    %v2463 = vpop.permute.xlu0 %2462
    %v2465 = vadd.f32 %v2422, %v2448
    %v2466 = vadd.f32 %v2427, %v2453
    %v2467 = vadd.f32 %v2432, %v2458
    %v2468 = vadd.f32 %v2437, %v2463
    %s2469 = scalar_lea.vmem %s4, 192
    %v2470 = vld [vmem:[%s2469] sm:$0xff]
    %v2471 = vld [vmem:[%s2469 + $0x8] sm:$0xff]
    %v2472 = vld [vmem:[%s2469 + $0x10] sm:$0xff]
    %v2473 = vld [vmem:[%s2469 + $0x18] sm:$0xff]
    %v2475 = vsel %vm955, %v2470, 0
    %v2478 = vsel %vm955, %v2471, 0
    %v2481 = vsel %vm955, %v2472, 0
    %v2484 = vsel %vm955, %v2473, 0
    %2486 = vmatprep.subr.mxu0 0.0
    %2487 = vmatpush1.msra.mxu0 %v2085
    %2488 = vmatprep.subr.mxu0 0.0
    %2489 = vmatpush1.msra.mxu0 %v2086
    %2490 = vmatprep.subr.mxu0 0.0
    %2491 = vmatpush1.msra.mxu0 %v2087
    %2492 = vmatprep.subr.mxu0 0.0
    %2493 = vmatpush1.msra.mxu0 %v2088
    %2494 = vmatprep.subr.mxu0 0.0
    %2495 = vmatpush1.msra.mxu0 0.0
    %2496 = vmatprep.subr.mxu0 0.0
    %2497 = vmatpush1.msra.mxu0 0.0
    %2498 = vmatprep.subr.mxu0 0.0
    %2499 = vmatpush1.msra.mxu0 0.0
    %2500 = vmatprep.subr.mxu0 0.0
    %2501 = vmatpush1.msra.mxu0 0.0
    %2502 = vmatprep.subr.mxu0 0.0
    %2503 = vmatpush1.msra.mxu0 0.0
    %2504 = vmatprep.subr.mxu0 0.0
    %2505 = vmatpush1.msra.mxu0 0.0
    %2506 = vmatprep.subr.mxu0 0.0
    %2507 = vmatpush1.msra.mxu0 0.0
    %2508 = vmatprep.subr.mxu0 0.0
    %2509 = vmatpush1.msra.mxu0 0.0
    %2510 = vmatprep.subr.mxu0 0.0
    %2511 = vmatpush1.msra.mxu0 0.0
    %2512 = vmatprep.subr.mxu0 0.0
    %2513 = vmatpush1.msra.mxu0 0.0
    %2514 = vmatprep.subr.mxu0 0.0
    %2515 = vmatpush1.msra.mxu0 0.0
    %2516 = vmatprep.subr.mxu0 0.0
    %2517 = vmatpush1.msra.mxu0 0.0
    %2518 = vmatprep.subr.mxu0 0.0
    %2519 = vmatpush1.msra.mxu0 0.0
    %2520 = vmatprep.subr.mxu0 0.0
    %2521 = vmatpush1.msra.mxu0 0.0
    %2522 = vmatprep.subr.mxu0 0.0
    %2523 = vmatpush1.msra.mxu0 0.0
    %2524 = vmatprep.subr.mxu0 0.0
    %2525 = vmatpush1.msra.mxu0 0.0
    %2526 = vmatprep.subr.mxu0 0.0
    %2527 = vmatpush1.msra.mxu0 0.0
    %2528 = vmatprep.subr.mxu0 0.0
    %2529 = vmatpush1.msra.mxu0 0.0
    %2530 = vmatprep.subr.mxu0 0.0
    %2531 = vmatpush1.msra.mxu0 0.0
    %2532 = vmatprep.subr.mxu0 0.0
    %2533 = vmatpush1.msra.mxu0 0.0
    %2534 = vmatprep.subr.mxu0 0.0
    %2535 = vmatpush1.msra.mxu0 0.0
    %2536 = vmatprep.subr.mxu0 0.0
    %2537 = vmatpush1.msra.mxu0 0.0
    %2538 = vmatprep.subr.mxu0 0.0
    %2539 = vmatpush1.msra.mxu0 0.0
    %2540 = vmatprep.subr.mxu0 0.0
    %2541 = vmatpush1.msra.mxu0 0.0
    %2542 = vmatprep.subr.mxu0 0.0
    %2543 = vmatpush1.msra.mxu0 0.0
    %2544 = vmatprep.subr.mxu0 0.0
    %2545 = vmatpush1.msra.mxu0 0.0
    %2546 = vmatprep.subr.mxu0 0.0
    %2547 = vmatpush1.msra.mxu0 0.0
    %2548 = vmatprep.subr.mxu0 0.0
    %2549 = vmatpush1.msra.mxu0 0.0
    %2550 = vmatprep.mubr.f32.mxu0 0.0
    %2551 = vmatmul.mubr.f32.gmra.mrb[0].mxu0 %v2475
    %v2552 = vpop.f32.mrb[0].mxu0
    %v2553 = vadd.f32 0.0, %v2552
    %v2554 = vpop.f32.mrb[0].mxu0
    %2555 = vmatprep.mubr.f32.mxu0 0.0
    %2556 = vmatmul.mubr.f32.gmra.mrb[0].mxu0 %v2478
    %v2557 = vpop.f32.mrb[0].mxu0
    %v2558 = vadd.f32 0.0, %v2557
    %v2559 = vpop.f32.mrb[0].mxu0
    %2560 = vmatprep.mubr.f32.mxu0 0.0
    %2561 = vmatmul.mubr.f32.gmra.mrb[0].mxu0 %v2481
    %v2562 = vpop.f32.mrb[0].mxu0
    %v2563 = vadd.f32 0.0, %v2562
    %v2564 = vpop.f32.mrb[0].mxu0
    %2565 = vmatprep.mubr.f32.mxu0 0.0
    %2566 = vmatmul.mubr.f32.gmra.mrb[0].mxu0 %v2484
    %v2567 = vpop.f32.mrb[0].mxu0
    %v2568 = vadd.f32 0.0, %v2567
    %v2569 = vpop.f32.mrb[0].mxu0
    %2570 = vdwg.mxu0
    %v2571 = vadd.f32 %v2465, %v2553
    %v2572 = vadd.f32 %v2466, %v2558
    %v2573 = vadd.f32 %v2467, %v2563
    %v2574 = vadd.f32 %v2468, %v2568
    %vm2575 = vcmp.gt.f32.partialorder %v2571, 0.0
    %vm2576 = vcmp.gt.f32.partialorder %v2572, 0.0
    %vm2577 = vcmp.gt.f32.partialorder %v2573, 0.0
    %vm2578 = vcmp.gt.f32.partialorder %v2574, 0.0
    %v2579 = vmul.f32 %v2571, 0.01
    %v2580 = vmul.f32 %v2572, 0.01
    %v2581 = vmul.f32 %v2573, 0.01
    %v2582 = vmul.f32 %v2574, 0.01
    %v2583 = vsel %vm2575, %v2571, %v2579
    %v2584 = vsel %vm2576, %v2572, %v2580
    %v2585 = vsel %vm2577, %v2573, %v2581
    %v2586 = vsel %vm2578, %v2574, %v2582
    %v2587 = vld [vmem:[%s7] sm:$0x1]
    %v2588 = vld [vmem:[%s8] sm:$0x1]
    %v2590 = vsel %vm955, %v2588, 0
    %2592 = vmatprep.subr.mxu0 0.0
    %2593 = vmatpush1.msra.mxu0 %v2334
    %2594 = vmatprep.subr.mxu0 0.0
    %2595 = vmatpush1.msra.mxu0 %v2335
    %2596 = vmatprep.subr.mxu0 0.0
    %2597 = vmatpush1.msra.mxu0 %v2336
    %2598 = vmatprep.subr.mxu0 0.0
    %2599 = vmatpush1.msra.mxu0 %v2337
    %2600 = vmatprep.subr.mxu0 0.0
    %2601 = vmatpush1.msra.mxu0 0.0
    %2602 = vmatprep.subr.mxu0 0.0
    %2603 = vmatpush1.msra.mxu0 0.0
    %2604 = vmatprep.subr.mxu0 0.0
    %2605 = vmatpush1.msra.mxu0 0.0
    %2606 = vmatprep.subr.mxu0 0.0
    %2607 = vmatpush1.msra.mxu0 0.0
    %2608 = vmatprep.subr.mxu0 0.0
    %2609 = vmatpush1.msra.mxu0 0.0
    %2610 = vmatprep.subr.mxu0 0.0
    %2611 = vmatpush1.msra.mxu0 0.0
    %2612 = vmatprep.subr.mxu0 0.0
    %2613 = vmatpush1.msra.mxu0 0.0
    %2614 = vmatprep.subr.mxu0 0.0
    %2615 = vmatpush1.msra.mxu0 0.0
    %2616 = vmatprep.subr.mxu0 0.0
    %2617 = vmatpush1.msra.mxu0 0.0
    %2618 = vmatprep.subr.mxu0 0.0
    %2619 = vmatpush1.msra.mxu0 0.0
    %2620 = vmatprep.subr.mxu0 0.0
    %2621 = vmatpush1.msra.mxu0 0.0
    %2622 = vmatprep.subr.mxu0 0.0
    %2623 = vmatpush1.msra.mxu0 0.0
    %2624 = vmatprep.subr.mxu0 0.0
    %2625 = vmatpush1.msra.mxu0 0.0
    %2626 = vmatprep.subr.mxu0 0.0
    %2627 = vmatpush1.msra.mxu0 0.0
    %2628 = vmatprep.subr.mxu0 0.0
    %2629 = vmatpush1.msra.mxu0 0.0
    %2630 = vmatprep.subr.mxu0 0.0
    %2631 = vmatpush1.msra.mxu0 0.0
    %2632 = vmatprep.subr.mxu0 0.0
    %2633 = vmatpush1.msra.mxu0 0.0
    %2634 = vmatprep.subr.mxu0 0.0
    %2635 = vmatpush1.msra.mxu0 0.0
    %2636 = vmatprep.subr.mxu0 0.0
    %2637 = vmatpush1.msra.mxu0 0.0
    %2638 = vmatprep.subr.mxu0 0.0
    %2639 = vmatpush1.msra.mxu0 0.0
    %2640 = vmatprep.subr.mxu0 0.0
    %2641 = vmatpush1.msra.mxu0 0.0
    %2642 = vmatprep.subr.mxu0 0.0
    %2643 = vmatpush1.msra.mxu0 0.0
    %2644 = vmatprep.subr.mxu0 0.0
    %2645 = vmatpush1.msra.mxu0 0.0
    %2646 = vmatprep.subr.mxu0 0.0
    %2647 = vmatpush1.msra.mxu0 0.0
    %2648 = vmatprep.subr.mxu0 0.0
    %2649 = vmatpush1.msra.mxu0 0.0
    %2650 = vmatprep.subr.mxu0 0.0
    %2651 = vmatpush1.msra.mxu0 0.0
    %2652 = vmatprep.subr.mxu0 0.0
    %2653 = vmatpush1.msra.mxu0 0.0
    %2654 = vmatprep.subr.mxu0 0.0
    %2655 = vmatpush1.msra.mxu0 0.0
    %2656 = vmatprep.mubr.f32.mxu0 0.0
    %2657 = vmatmul.mubr.f32.gmra.mrb[0].mxu0 %v2590
    %v2658 = vpop.f32.mrb[0].mxu0
    %v2659 = vadd.f32 0.0, %v2658
    %v2660 = vpop.f32.mrb[0].mxu0
    %2661 = vdwg.mxu0
    %v2663 = vsel %vm955, %v2587, 0
    %2665 = vmatprep.subr.mxu0 0.0
    %2666 = vmatpush1.msra.mxu0 %v2583
    %2667 = vmatprep.subr.mxu0 0.0
    %2668 = vmatpush1.msra.mxu0 %v2584
    %2669 = vmatprep.subr.mxu0 0.0
    %2670 = vmatpush1.msra.mxu0 %v2585
    %2671 = vmatprep.subr.mxu0 0.0
    %2672 = vmatpush1.msra.mxu0 %v2586
    %2673 = vmatprep.subr.mxu0 0.0
    %2674 = vmatpush1.msra.mxu0 0.0
    %2675 = vmatprep.subr.mxu0 0.0
    %2676 = vmatpush1.msra.mxu0 0.0
    %2677 = vmatprep.subr.mxu0 0.0
    %2678 = vmatpush1.msra.mxu0 0.0
    %2679 = vmatprep.subr.mxu0 0.0
    %2680 = vmatpush1.msra.mxu0 0.0
    %2681 = vmatprep.subr.mxu0 0.0
    %2682 = vmatpush1.msra.mxu0 0.0
    %2683 = vmatprep.subr.mxu0 0.0
    %2684 = vmatpush1.msra.mxu0 0.0
    %2685 = vmatprep.subr.mxu0 0.0
    %2686 = vmatpush1.msra.mxu0 0.0
    %2687 = vmatprep.subr.mxu0 0.0
    %2688 = vmatpush1.msra.mxu0 0.0
    %2689 = vmatprep.subr.mxu0 0.0
    %2690 = vmatpush1.msra.mxu0 0.0
    %2691 = vmatprep.subr.mxu0 0.0
    %2692 = vmatpush1.msra.mxu0 0.0
    %2693 = vmatprep.subr.mxu0 0.0
    %2694 = vmatpush1.msra.mxu0 0.0
    %2695 = vmatprep.subr.mxu0 0.0
    %2696 = vmatpush1.msra.mxu0 0.0
    %2697 = vmatprep.subr.mxu0 0.0
    %2698 = vmatpush1.msra.mxu0 0.0
    %2699 = vmatprep.subr.mxu0 0.0
    %2700 = vmatpush1.msra.mxu0 0.0
    %2701 = vmatprep.subr.mxu0 0.0
    %2702 = vmatpush1.msra.mxu0 0.0
    %2703 = vmatprep.subr.mxu0 0.0
    %2704 = vmatpush1.msra.mxu0 0.0
    %2705 = vmatprep.subr.mxu0 0.0
    %2706 = vmatpush1.msra.mxu0 0.0
    %2707 = vmatprep.subr.mxu0 0.0
    %2708 = vmatpush1.msra.mxu0 0.0
    %2709 = vmatprep.subr.mxu0 0.0
    %2710 = vmatpush1.msra.mxu0 0.0
    %2711 = vmatprep.subr.mxu0 0.0
    %2712 = vmatpush1.msra.mxu0 0.0
    %2713 = vmatprep.subr.mxu0 0.0
    %2714 = vmatpush1.msra.mxu0 0.0
    %2715 = vmatprep.subr.mxu0 0.0
    %2716 = vmatpush1.msra.mxu0 0.0
    %2717 = vmatprep.subr.mxu0 0.0
    %2718 = vmatpush1.msra.mxu0 0.0
    %2719 = vmatprep.subr.mxu0 0.0
    %2720 = vmatpush1.msra.mxu0 0.0
    %2721 = vmatprep.subr.mxu0 0.0
    %2722 = vmatpush1.msra.mxu0 0.0
    %2723 = vmatprep.subr.mxu0 0.0
    %2724 = vmatpush1.msra.mxu0 0.0
    %2725 = vmatprep.subr.mxu0 0.0
    %2726 = vmatpush1.msra.mxu0 0.0
    %2727 = vmatprep.subr.mxu0 0.0
    %2728 = vmatpush1.msra.mxu0 0.0
    %2729 = vmatprep.mubr.f32.mxu0 0.0
    %2730 = vmatmul.mubr.f32.gmra.mrb[0].mxu0 %v2663
    %v2731 = vpop.f32.mrb[0].mxu0
    %v2732 = vadd.f32 %v2659, %v2731
    %v2733 = vpop.f32.mrb[0].mxu0
    %2734 = vdwg.mxu0
    %v2735 = vadd.f32 %v2732, %v811
    %v2736 = vld [vmem:[#allocation2] sm:$0x1]
    %2738 = vset.pattern.permute.xlu0 0
    %2739 = vperm.xlu0 %2738, %v2736
    %v2740 = vpop.permute.xlu0 %2739
    %v2742 = vlaneseq
    %v2743 = vshrl.u32 %v2742, 7
    %v2744 = vsub.s32 0, %v2743
    %v2745 = vrot.slane %v2740, %v2744
    %v2746 = vadd.f32 %v2735, %v2745
    %v2747 = vtanh.pop %v2746
    %v2748 = vadd.f32 %v2747, 1.0
    %v2749 = vmul.f32 %v2748, 0.5
    %vm2750 = vcmask 122880
    %2751 = vst.msk [vmem:[#allocation3] sm:$0x1] %vm2750, %v2749
    // Predicated region
    $region42: #{tpu_custom_call.1} parent=1 // pred_check
      _
    $region43: #{tpu_custom_call.1} parent=1 // pred_check_branch
      %2753 = sbr.rel (0) target = $region45
    $region44: #{tpu_custom_call.1} parent=1 // pred_region
      %s2755 = ssub.s32 16, 16
      %2756 = vsyncadd [#allocation4], %s2755
      %s2758 = sshll.u32 [#allocation3], 4
      %s2759 = int_to_ptr.vmem [resolvable:$true] %s2758
      %2761 = dma.vmem_to_hbm [thread:$0]  %s2759, 16, %s10, [#allocation4]
    $region45: #{tpu_custom_call.1} parent=1 // pred_fallthru
      _
    // Predicated region
    $region46: #{tpu_custom_call.1} parent=1 // pred_check
      _
    $region47: #{tpu_custom_call.1} parent=1 // pred_check_branch
      %2763 = sbr.rel (0) target = $region49
    $region48: #{tpu_custom_call.1} parent=1 // pred_region
      %2764 = dma.done [#allocation4], 16
    $region49: #{tpu_custom_call.1} parent=1 // pred_fallthru
      _
    %2765 = vsyncpa [#allocation4], 1

</llo_original>
